<compile_context>
chip_gen: v7x
topology: tpu7x:2x2x1
jax: 0.10.0
libtpu: 0.0.40
codegen_flags: <defaults>
</compile_context>

<pallas_src>
import jax
import jax.numpy as jnp
from jax import lax
from jax.experimental import pallas as pl
from jax.experimental.pallas import tpu as pltpu


def esa_kernel(xcat_ref, wih_ref, whh_ref, b_ref, h0_ref, c0_ref,
               out_ref, hs_f_ref, hs_b_ref):
    S = xcat_ref.shape[0]
    H2 = h0_ref.shape[1]          # 2H
    H = H2 // 2

    # Fused input projection, both directions, all timesteps: (S, 8H), kept in vregs.
    xp = jnp.dot(xcat_ref[...], wih_ref[...],
                 preferred_element_type=jnp.float32) + b_ref[...]
    whh = whh_ref[...]            # (2H, 8H) block-diagonal hidden->gate weights

    h = h0_ref[...]               # (1, 2H) = [h_fwd | h_bwd]
    c = c0_ref[...]               # (1, 2H)

    for t in range(S):            # fully unrolled; S is a compile-time constant
        # One MXU dot covers both directions' hidden->gate projections.
        gates = xp[t:t + 1, :] + jnp.dot(h, whh,
                                         preferred_element_type=jnp.float32)  # (1, 8H)
        # Gate layout: [i_f, i_b, f_f, f_b, o_f, o_b, g_f, g_b]
        sg = jax.nn.sigmoid(gates[:, 0:6 * H])      # one EUP push over 6H lanes
        gg = jnp.tanh(gates[:, 6 * H:8 * H])        # one EUP push over 2H lanes
        i_ = sg[:, 0:2 * H]
        f_ = sg[:, 2 * H:4 * H]
        o_ = sg[:, 4 * H:6 * H]
        c = f_ * c + i_ * gg
        h = o_ * jnp.tanh(c)
        # lstm_out[position]: fwd half belongs to position t, bwd half to position S-1-t.
        hs_f_ref[t:t + 1, :] = h[:, 0:H]
        hs_b_ref[S - 1 - t:S - t, :] = h[:, H:2 * H]

    # Attention: score[p] = <h_fwd[p], hn_f> + <h_bwd[p], hn_b>, softmax over p.
    hn = h                                                           # (1, 2H)
    hs = jnp.concatenate([hs_f_ref[...], hs_b_ref[...]], axis=-1)    # (S, 2H), position order
    scores = lax.dot_general(hn, hs, (((1,), (1,)), ((), ())),
                             preferred_element_type=jnp.float32)     # (1, S)
    m = jnp.max(scores, axis=-1, keepdims=True)
    e = jnp.exp(scores - m)
    out_ref[...] = e / jnp.sum(e, axis=-1, keepdims=True)


def _pack_gate_cols(wf, wb, H):
    # wf, wb: (..., 4H) with PyTorch gate order (i, f, g, o) along the last axis.
    # Returns (..., 8H) with columns [i_f, i_b, f_f, f_b, o_f, o_b, g_f, g_b].
    def g(w, k):
        return w[..., k * H:(k + 1) * H]
    return jnp.concatenate([g(wf, 0), g(wb, 0), g(wf, 1), g(wb, 1),
                            g(wf, 3), g(wb, 3), g(wf, 2), g(wb, 2)], axis=-1)


def _pack_block_diag(wf, wb, H):
    # wf, wb: (R, 4H). Returns (2R, 8H): rows 0:R feed only fwd-gate columns,
    # rows R:2R feed only bwd-gate columns (exact zeros elsewhere).
    top = _pack_gate_cols(wf, jnp.zeros_like(wb), H)
    bot = _pack_gate_cols(jnp.zeros_like(wf), wb, H)
    return jnp.concatenate([top, bot], axis=0)


def esa_forward(pred_ids, obj_emb, params):
    # Glue: embedding gather + concat (torch.cat(..., dim=2)) done in plain JAX.
    emb = params['embedding'][pred_ids[:, 0]]                       # (S, E)
    x = jnp.concatenate([emb, obj_emb[:, 0, :]], axis=-1)           # (S, D)
    x = x.astype(jnp.float32)
    S, _ = x.shape
    H = params['whh_f'].shape[0]

    # One-time wrapper-side packing (free relative to the kernel).
    x_cat = jnp.concatenate([x, x[::-1]], axis=-1)                  # (S, 2D)
    wih = _pack_block_diag(params['wih_f'], params['wih_b'], H)     # (2D, 8H)
    whh = _pack_block_diag(params['whh_f'], params['whh_b'], H)     # (2H, 8H)
    b = _pack_gate_cols(params['b_f'], params['b_b'], H)            # (1, 8H)
    h0 = params['h0'].reshape(1, 2 * H)                             # [h0_f | h0_b]
    c0 = params['c0'].reshape(1, 2 * H)

    out = pl.pallas_call(
        esa_kernel,
        out_shape=jax.ShapeDtypeStruct((1, S), jnp.float32),
        in_specs=[pl.BlockSpec(memory_space=pltpu.MemorySpace.VMEM)] * 6,
        out_specs=pl.BlockSpec(memory_space=pltpu.MemorySpace.VMEM),
        scratch_shapes=[pltpu.VMEM((S, H), jnp.float32),            # h_fwd per position
                        pltpu.VMEM((S, H), jnp.float32)],           # h_bwd per position
    )(x_cat, wih, whh, b, h0, c0)
    return out.reshape(-1, 1)                                       # (S, 1), matches view(-1, 1)


def esa_reference(pred_ids, obj_emb, params):
    # Pure-JAX reference mirroring the PyTorch forward (unpacked params).
    emb = params['embedding'][pred_ids[:, 0]]
    x = jnp.concatenate([emb, obj_emb[:, 0, :]], axis=-1)
    H = params['whh_f'].shape[0]

    def run(x_seq, wih, whh, b, h0, c0):
        def step(carry, xt):
            h, c = carry
            g = xt @ wih + h @ whh + b[0]
            i = jax.nn.sigmoid(g[0:H]); f = jax.nn.sigmoid(g[H:2 * H])
            gg = jnp.tanh(g[2 * H:3 * H]); o = jax.nn.sigmoid(g[3 * H:4 * H])
            c = f * c + i * gg
            h = o * jnp.tanh(c)
            return (h, c), h
        (hn, _), hs = lax.scan(step, (h0, c0), x_seq)
        return hs, hn

    hs_f, hn_f = run(x, params['wih_f'], params['whh_f'], params['b_f'],
                     params['h0'][0], params['c0'][0])
    hs_b_rev, hn_b = run(x[::-1], params['wih_b'], params['whh_b'], params['b_b'],
                         params['h0'][1], params['c0'][1])
    hs_b = hs_b_rev[::-1]
    scores = hs_f @ hn_f + hs_b @ hn_b
    return jax.nn.softmax(scores).reshape(-1, 1)


if __name__ == "__main__":
    pred2ix_size = 20
    pred_embedding_dim = 16
    transE_dim = 16
    hidden_size = 32
    S = 8
    D = pred_embedding_dim + transE_dim
    H = hidden_size

    ks = jax.random.split(jax.random.PRNGKey(0), 11)
    params = {
        'embedding': jax.random.normal(ks[0], (pred2ix_size, pred_embedding_dim), jnp.float32) * 0.5,
        'wih_f': jax.random.normal(ks[1], (D, 4 * H), jnp.float32) * 0.1,
        'whh_f': jax.random.normal(ks[2], (H, 4 * H), jnp.float32) * 0.1,
        'b_f':   jax.random.normal(ks[3], (1, 4 * H), jnp.float32) * 0.1,
        'wih_b': jax.random.normal(ks[4], (D, 4 * H), jnp.float32) * 0.1,
        'whh_b': jax.random.normal(ks[5], (H, 4 * H), jnp.float32) * 0.1,
        'b_b':   jax.random.normal(ks[6], (1, 4 * H), jnp.float32) * 0.1,
        # torch.randn initial (h0, c0) for the two directions
        'h0': jax.random.normal(ks[7], (2, H), jnp.float32),
        'c0': jax.random.normal(ks[8], (2, H), jnp.float32),
    }
    # input_tensor[0]: predicate ids (S, 1); input_tensor[1]: transE object embeddings (S, 1, transE_dim)
    pred_ids = jax.random.randint(ks[9], (S, 1), 0, pred2ix_size)
    obj_emb = jax.random.normal(ks[10], (S, 1, transE_dim), jnp.float32)

    out = jax.block_until_ready(esa_forward(pred_ids, obj_emb, params))
    ref = esa_reference(pred_ids, obj_emb, params)

    assert out.shape == (S, 1), out.shape
    assert jnp.allclose(jnp.sum(out), 1.0, atol=1e-5)
    assert jnp.allclose(out, ref, atol=1e-5, rtol=1e-5), (out, ref)
    print("KERNEL_OK")
</pallas_src>

<mosaic_0001>
module attributes {stable_mosaic.version = 11 : i64} {
  func.func @esa_kernel(%arg0: memref<8x64xf32, #tpu.memory_space<vmem>>, %arg1: memref<64x256xf32, #tpu.memory_space<vmem>>, %arg2: memref<64x256xf32, #tpu.memory_space<vmem>>, %arg3: memref<1x256xf32, #tpu.memory_space<vmem>>, %arg4: memref<1x64xf32, #tpu.memory_space<vmem>>, %arg5: memref<1x64xf32, #tpu.memory_space<vmem>>, %arg6: memref<1x8xf32, #tpu.memory_space<vmem>>, %arg7: memref<8x32xf32, #tpu.memory_space<vmem>>, %arg8: memref<8x32xf32, #tpu.memory_space<vmem>>) attributes {dimension_semantics = [], scalar_prefetch = 0 : i64, scratch_operands = 2 : i64, tpu.core_type = #tpu.core_type<tc>} {
    %c0 = arith.constant 0 : index
    %c0_0 = arith.constant 0 : index
    %0 = vector.load %arg0[%c0, %c0_0] : memref<8x64xf32, #tpu.memory_space<vmem>>, vector<8x64xf32>
    %c0_1 = arith.constant 0 : index
    %c0_2 = arith.constant 0 : index
    %1 = vector.load %arg1[%c0_1, %c0_2] : memref<64x256xf32, #tpu.memory_space<vmem>>, vector<64x256xf32>
    %cst = arith.constant dense<0.000000e+00> : vector<8x256xf32>
    %2 = tpu.matmul %0, %1, %cst {dimension_numbers = #tpu.dot_dimension_numbers<[1], [0], [0], [1], [0, 0, 1, 1], [], []>} : vector<8x64xf32>, vector<64x256xf32>, vector<8x256xf32> -> vector<8x256xf32>
    %c0_3 = arith.constant 0 : index
    %c0_4 = arith.constant 0 : index
    %3 = vector.load %arg3[%c0_3, %c0_4] : memref<1x256xf32, #tpu.memory_space<vmem>>, vector<1x256xf32>
    %4 = vector.broadcast %3 : vector<1x256xf32> to vector<8x256xf32>
    %5 = arith.addf %2, %4 : vector<8x256xf32>
    %c0_5 = arith.constant 0 : index
    %c0_6 = arith.constant 0 : index
    %6 = vector.load %arg2[%c0_5, %c0_6] : memref<64x256xf32, #tpu.memory_space<vmem>>, vector<64x256xf32>
    %c0_7 = arith.constant 0 : index
    %c0_8 = arith.constant 0 : index
    %7 = vector.load %arg4[%c0_7, %c0_8] : memref<1x64xf32, #tpu.memory_space<vmem>>, vector<1x64xf32>
    %c0_9 = arith.constant 0 : index
    %c0_10 = arith.constant 0 : index
    %8 = vector.load %arg5[%c0_9, %c0_10] : memref<1x64xf32, #tpu.memory_space<vmem>>, vector<1x64xf32>
    %9 = vector.extract_strided_slice %5 {offsets = [0, 0], sizes = [1, 256], strides = [1, 1]} : vector<8x256xf32> to vector<1x256xf32>
    %cst_11 = arith.constant dense<0.000000e+00> : vector<1x256xf32>
    %10 = tpu.matmul %7, %6, %cst_11 {dimension_numbers = #tpu.dot_dimension_numbers<[1], [0], [0], [1], [0, 0, 1, 1], [], []>} : vector<1x64xf32>, vector<64x256xf32>, vector<1x256xf32> -> vector<1x256xf32>
    %11 = arith.addf %9, %10 : vector<1x256xf32>
    %12 = vector.extract_strided_slice %11 {offsets = [0, 0], sizes = [1, 192], strides = [1, 1]} : vector<1x256xf32> to vector<1x192xf32>
    %13 = arith.negf %12 : vector<1x192xf32>
    %14 = math.exp %13 : vector<1x192xf32>
    %cst_12 = arith.constant 1.000000e+00 : f32
    %15 = vector.broadcast %cst_12 : f32 to vector<1x192xf32>
    %16 = arith.addf %15, %14 : vector<1x192xf32>
    %17 = arith.divf %15, %16 : vector<1x192xf32>
    %18 = vector.extract_strided_slice %11 {offsets = [0, 192], sizes = [1, 64], strides = [1, 1]} : vector<1x256xf32> to vector<1x64xf32>
    %19 = math.tanh %18 : vector<1x64xf32>
    %20 = vector.extract_strided_slice %17 {offsets = [0, 0], sizes = [1, 64], strides = [1, 1]} : vector<1x192xf32> to vector<1x64xf32>
    %21 = vector.extract_strided_slice %17 {offsets = [0, 64], sizes = [1, 64], strides = [1, 1]} : vector<1x192xf32> to vector<1x64xf32>
    %22 = vector.extract_strided_slice %17 {offsets = [0, 128], sizes = [1, 64], strides = [1, 1]} : vector<1x192xf32> to vector<1x64xf32>
    %23 = arith.mulf %21, %8 : vector<1x64xf32>
    %24 = arith.mulf %20, %19 : vector<1x64xf32>
    %25 = arith.addf %23, %24 : vector<1x64xf32>
    %26 = math.tanh %25 : vector<1x64xf32>
    %27 = arith.mulf %22, %26 : vector<1x64xf32>
    %28 = vector.extract_strided_slice %27 {offsets = [0, 0], sizes = [1, 32], strides = [1, 1]} : vector<1x64xf32> to vector<1x32xf32>
    %c0_13 = arith.constant 0 : index
    %c0_14 = arith.constant 0 : index
    %29 = vector.load %arg7[%c0_13, %c0_14] : memref<8x32xf32, #tpu.memory_space<vmem>>, vector<1x32xf32>
    tpu.vector_store %arg7[%c0_13, %c0_14], %28 {strides = array<i32>} : memref<8x32xf32, #tpu.memory_space<vmem>>, vector<1x32xf32>,
    %30 = vector.extract_strided_slice %27 {offsets = [0, 32], sizes = [1, 32], strides = [1, 1]} : vector<1x64xf32> to vector<1x32xf32>
    %c7 = arith.constant 7 : index
    %c0_15 = arith.constant 0 : index
    %31 = vector.load %arg8[%c7, %c0_15] : memref<8x32xf32, #tpu.memory_space<vmem>>, vector<1x32xf32>
    tpu.vector_store %arg8[%c7, %c0_15], %30 {strides = array<i32>} : memref<8x32xf32, #tpu.memory_space<vmem>>, vector<1x32xf32>,
    %32 = vector.extract_strided_slice %5 {offsets = [1, 0], sizes = [1, 256], strides = [1, 1]} : vector<8x256xf32> to vector<1x256xf32>
    %cst_16 = arith.constant dense<0.000000e+00> : vector<1x256xf32>
    %33 = tpu.matmul %27, %6, %cst_16 {dimension_numbers = #tpu.dot_dimension_numbers<[1], [0], [0], [1], [0, 0, 1, 1], [], []>} : vector<1x64xf32>, vector<64x256xf32>, vector<1x256xf32> -> vector<1x256xf32>
    %34 = arith.addf %32, %33 : vector<1x256xf32>
    %35 = vector.extract_strided_slice %34 {offsets = [0, 0], sizes = [1, 192], strides = [1, 1]} : vector<1x256xf32> to vector<1x192xf32>
    %36 = arith.negf %35 : vector<1x192xf32>
    %37 = math.exp %36 : vector<1x192xf32>
    %cst_17 = arith.constant 1.000000e+00 : f32
    %38 = vector.broadcast %cst_17 : f32 to vector<1x192xf32>
    %39 = arith.addf %38, %37 : vector<1x192xf32>
    %40 = arith.divf %38, %39 : vector<1x192xf32>
    %41 = vector.extract_strided_slice %34 {offsets = [0, 192], sizes = [1, 64], strides = [1, 1]} : vector<1x256xf32> to vector<1x64xf32>
    %42 = math.tanh %41 : vector<1x64xf32>
    %43 = vector.extract_strided_slice %40 {offsets = [0, 0], sizes = [1, 64], strides = [1, 1]} : vector<1x192xf32> to vector<1x64xf32>
    %44 = vector.extract_strided_slice %40 {offsets = [0, 64], sizes = [1, 64], strides = [1, 1]} : vector<1x192xf32> to vector<1x64xf32>
    %45 = vector.extract_strided_slice %40 {offsets = [0, 128], sizes = [1, 64], strides = [1, 1]} : vector<1x192xf32> to vector<1x64xf32>
    %46 = arith.mulf %44, %25 : vector<1x64xf32>
    %47 = arith.mulf %43, %42 : vector<1x64xf32>
    %48 = arith.addf %46, %47 : vector<1x64xf32>
    %49 = math.tanh %48 : vector<1x64xf32>
    %50 = arith.mulf %45, %49 : vector<1x64xf32>
    %51 = vector.extract_strided_slice %50 {offsets = [0, 0], sizes = [1, 32], strides = [1, 1]} : vector<1x64xf32> to vector<1x32xf32>
    %c1 = arith.constant 1 : index
    %c0_18 = arith.constant 0 : index
    %52 = vector.load %arg7[%c1, %c0_18] : memref<8x32xf32, #tpu.memory_space<vmem>>, vector<1x32xf32>
    tpu.vector_store %arg7[%c1, %c0_18], %51 {strides = array<i32>} : memref<8x32xf32, #tpu.memory_space<vmem>>, vector<1x32xf32>,
    %53 = vector.extract_strided_slice %50 {offsets = [0, 32], sizes = [1, 32], strides = [1, 1]} : vector<1x64xf32> to vector<1x32xf32>
    %c6 = arith.constant 6 : index
    %c0_19 = arith.constant 0 : index
    %54 = vector.load %arg8[%c6, %c0_19] : memref<8x32xf32, #tpu.memory_space<vmem>>, vector<1x32xf32>
    tpu.vector_store %arg8[%c6, %c0_19], %53 {strides = array<i32>} : memref<8x32xf32, #tpu.memory_space<vmem>>, vector<1x32xf32>,
    %55 = vector.extract_strided_slice %5 {offsets = [2, 0], sizes = [1, 256], strides = [1, 1]} : vector<8x256xf32> to vector<1x256xf32>
    %cst_20 = arith.constant dense<0.000000e+00> : vector<1x256xf32>
    %56 = tpu.matmul %50, %6, %cst_20 {dimension_numbers = #tpu.dot_dimension_numbers<[1], [0], [0], [1], [0, 0, 1, 1], [], []>} : vector<1x64xf32>, vector<64x256xf32>, vector<1x256xf32> -> vector<1x256xf32>
    %57 = arith.addf %55, %56 : vector<1x256xf32>
    %58 = vector.extract_strided_slice %57 {offsets = [0, 0], sizes = [1, 192], strides = [1, 1]} : vector<1x256xf32> to vector<1x192xf32>
    %59 = arith.negf %58 : vector<1x192xf32>
    %60 = math.exp %59 : vector<1x192xf32>
    %cst_21 = arith.constant 1.000000e+00 : f32
    %61 = vector.broadcast %cst_21 : f32 to vector<1x192xf32>
    %62 = arith.addf %61, %60 : vector<1x192xf32>
    %63 = arith.divf %61, %62 : vector<1x192xf32>
    %64 = vector.extract_strided_slice %57 {offsets = [0, 192], sizes = [1, 64], strides = [1, 1]} : vector<1x256xf32> to vector<1x64xf32>
    %65 = math.tanh %64 : vector<1x64xf32>
    %66 = vector.extract_strided_slice %63 {offsets = [0, 0], sizes = [1, 64], strides = [1, 1]} : vector<1x192xf32> to vector<1x64xf32>
    %67 = vector.extract_strided_slice %63 {offsets = [0, 64], sizes = [1, 64], strides = [1, 1]} : vector<1x192xf32> to vector<1x64xf32>
    %68 = vector.extract_strided_slice %63 {offsets = [0, 128], sizes = [1, 64], strides = [1, 1]} : vector<1x192xf32> to vector<1x64xf32>
    %69 = arith.mulf %67, %48 : vector<1x64xf32>
    %70 = arith.mulf %66, %65 : vector<1x64xf32>
    %71 = arith.addf %69, %70 : vector<1x64xf32>
    %72 = math.tanh %71 : vector<1x64xf32>
    %73 = arith.mulf %68, %72 : vector<1x64xf32>
    %74 = vector.extract_strided_slice %73 {offsets = [0, 0], sizes = [1, 32], strides = [1, 1]} : vector<1x64xf32> to vector<1x32xf32>
    %c2 = arith.constant 2 : index
    %c0_22 = arith.constant 0 : index
    %75 = vector.load %arg7[%c2, %c0_22] : memref<8x32xf32, #tpu.memory_space<vmem>>, vector<1x32xf32>
    tpu.vector_store %arg7[%c2, %c0_22], %74 {strides = array<i32>} : memref<8x32xf32, #tpu.memory_space<vmem>>, vector<1x32xf32>,
    %76 = vector.extract_strided_slice %73 {offsets = [0, 32], sizes = [1, 32], strides = [1, 1]} : vector<1x64xf32> to vector<1x32xf32>
    %c5 = arith.constant 5 : index
    %c0_23 = arith.constant 0 : index
    %77 = vector.load %arg8[%c5, %c0_23] : memref<8x32xf32, #tpu.memory_space<vmem>>, vector<1x32xf32>
    tpu.vector_store %arg8[%c5, %c0_23], %76 {strides = array<i32>} : memref<8x32xf32, #tpu.memory_space<vmem>>, vector<1x32xf32>,
    %78 = vector.extract_strided_slice %5 {offsets = [3, 0], sizes = [1, 256], strides = [1, 1]} : vector<8x256xf32> to vector<1x256xf32>
    %cst_24 = arith.constant dense<0.000000e+00> : vector<1x256xf32>
    %79 = tpu.matmul %73, %6, %cst_24 {dimension_numbers = #tpu.dot_dimension_numbers<[1], [0], [0], [1], [0, 0, 1, 1], [], []>} : vector<1x64xf32>, vector<64x256xf32>, vector<1x256xf32> -> vector<1x256xf32>
    %80 = arith.addf %78, %79 : vector<1x256xf32>
    %81 = vector.extract_strided_slice %80 {offsets = [0, 0], sizes = [1, 192], strides = [1, 1]} : vector<1x256xf32> to vector<1x192xf32>
    %82 = arith.negf %81 : vector<1x192xf32>
    %83 = math.exp %82 : vector<1x192xf32>
    %cst_25 = arith.constant 1.000000e+00 : f32
    %84 = vector.broadcast %cst_25 : f32 to vector<1x192xf32>
    %85 = arith.addf %84, %83 : vector<1x192xf32>
    %86 = arith.divf %84, %85 : vector<1x192xf32>
    %87 = vector.extract_strided_slice %80 {offsets = [0, 192], sizes = [1, 64], strides = [1, 1]} : vector<1x256xf32> to vector<1x64xf32>
    %88 = math.tanh %87 : vector<1x64xf32>
    %89 = vector.extract_strided_slice %86 {offsets = [0, 0], sizes = [1, 64], strides = [1, 1]} : vector<1x192xf32> to vector<1x64xf32>
    %90 = vector.extract_strided_slice %86 {offsets = [0, 64], sizes = [1, 64], strides = [1, 1]} : vector<1x192xf32> to vector<1x64xf32>
    %91 = vector.extract_strided_slice %86 {offsets = [0, 128], sizes = [1, 64], strides = [1, 1]} : vector<1x192xf32> to vector<1x64xf32>
    %92 = arith.mulf %90, %71 : vector<1x64xf32>
    %93 = arith.mulf %89, %88 : vector<1x64xf32>
    %94 = arith.addf %92, %93 : vector<1x64xf32>
    %95 = math.tanh %94 : vector<1x64xf32>
    %96 = arith.mulf %91, %95 : vector<1x64xf32>
    %97 = vector.extract_strided_slice %96 {offsets = [0, 0], sizes = [1, 32], strides = [1, 1]} : vector<1x64xf32> to vector<1x32xf32>
    %c3 = arith.constant 3 : index
    %c0_26 = arith.constant 0 : index
    %98 = vector.load %arg7[%c3, %c0_26] : memref<8x32xf32, #tpu.memory_space<vmem>>, vector<1x32xf32>
    tpu.vector_store %arg7[%c3, %c0_26], %97 {strides = array<i32>} : memref<8x32xf32, #tpu.memory_space<vmem>>, vector<1x32xf32>,
    %99 = vector.extract_strided_slice %96 {offsets = [0, 32], sizes = [1, 32], strides = [1, 1]} : vector<1x64xf32> to vector<1x32xf32>
    %c4 = arith.constant 4 : index
    %c0_27 = arith.constant 0 : index
    %100 = vector.load %arg8[%c4, %c0_27] : memref<8x32xf32, #tpu.memory_space<vmem>>, vector<1x32xf32>
    tpu.vector_store %arg8[%c4, %c0_27], %99 {strides = array<i32>} : memref<8x32xf32, #tpu.memory_space<vmem>>, vector<1x32xf32>,
    %101 = vector.extract_strided_slice %5 {offsets = [4, 0], sizes = [1, 256], strides = [1, 1]} : vector<8x256xf32> to vector<1x256xf32>
    %cst_28 = arith.constant dense<0.000000e+00> : vector<1x256xf32>
    %102 = tpu.matmul %96, %6, %cst_28 {dimension_numbers = #tpu.dot_dimension_numbers<[1], [0], [0], [1], [0, 0, 1, 1], [], []>} : vector<1x64xf32>, vector<64x256xf32>, vector<1x256xf32> -> vector<1x256xf32>
    %103 = arith.addf %101, %102 : vector<1x256xf32>
    %104 = vector.extract_strided_slice %103 {offsets = [0, 0], sizes = [1, 192], strides = [1, 1]} : vector<1x256xf32> to vector<1x192xf32>
    %105 = arith.negf %104 : vector<1x192xf32>
    %106 = math.exp %105 : vector<1x192xf32>
    %cst_29 = arith.constant 1.000000e+00 : f32
    %107 = vector.broadcast %cst_29 : f32 to vector<1x192xf32>
    %108 = arith.addf %107, %106 : vector<1x192xf32>
    %109 = arith.divf %107, %108 : vector<1x192xf32>
    %110 = vector.extract_strided_slice %103 {offsets = [0, 192], sizes = [1, 64], strides = [1, 1]} : vector<1x256xf32> to vector<1x64xf32>
    %111 = math.tanh %110 : vector<1x64xf32>
    %112 = vector.extract_strided_slice %109 {offsets = [0, 0], sizes = [1, 64], strides = [1, 1]} : vector<1x192xf32> to vector<1x64xf32>
    %113 = vector.extract_strided_slice %109 {offsets = [0, 64], sizes = [1, 64], strides = [1, 1]} : vector<1x192xf32> to vector<1x64xf32>
    %114 = vector.extract_strided_slice %109 {offsets = [0, 128], sizes = [1, 64], strides = [1, 1]} : vector<1x192xf32> to vector<1x64xf32>
    %115 = arith.mulf %113, %94 : vector<1x64xf32>
    %116 = arith.mulf %112, %111 : vector<1x64xf32>
    %117 = arith.addf %115, %116 : vector<1x64xf32>
    %118 = math.tanh %117 : vector<1x64xf32>
    %119 = arith.mulf %114, %118 : vector<1x64xf32>
    %120 = vector.extract_strided_slice %119 {offsets = [0, 0], sizes = [1, 32], strides = [1, 1]} : vector<1x64xf32> to vector<1x32xf32>
    %c4_30 = arith.constant 4 : index
    %c0_31 = arith.constant 0 : index
    %121 = vector.load %arg7[%c4_30, %c0_31] : memref<8x32xf32, #tpu.memory_space<vmem>>, vector<1x32xf32>
    tpu.vector_store %arg7[%c4_30, %c0_31], %120 {strides = array<i32>} : memref<8x32xf32, #tpu.memory_space<vmem>>, vector<1x32xf32>,
    %122 = vector.extract_strided_slice %119 {offsets = [0, 32], sizes = [1, 32], strides = [1, 1]} : vector<1x64xf32> to vector<1x32xf32>
    %c3_32 = arith.constant 3 : index
    %c0_33 = arith.constant 0 : index
    %123 = vector.load %arg8[%c3_32, %c0_33] : memref<8x32xf32, #tpu.memory_space<vmem>>, vector<1x32xf32>
    tpu.vector_store %arg8[%c3_32, %c0_33], %122 {strides = array<i32>} : memref<8x32xf32, #tpu.memory_space<vmem>>, vector<1x32xf32>,
    %124 = vector.extract_strided_slice %5 {offsets = [5, 0], sizes = [1, 256], strides = [1, 1]} : vector<8x256xf32> to vector<1x256xf32>
    %cst_34 = arith.constant dense<0.000000e+00> : vector<1x256xf32>
    %125 = tpu.matmul %119, %6, %cst_34 {dimension_numbers = #tpu.dot_dimension_numbers<[1], [0], [0], [1], [0, 0, 1, 1], [], []>} : vector<1x64xf32>, vector<64x256xf32>, vector<1x256xf32> -> vector<1x256xf32>
    %126 = arith.addf %124, %125 : vector<1x256xf32>
    %127 = vector.extract_strided_slice %126 {offsets = [0, 0], sizes = [1, 192], strides = [1, 1]} : vector<1x256xf32> to vector<1x192xf32>
    %128 = arith.negf %127 : vector<1x192xf32>
    %129 = math.exp %128 : vector<1x192xf32>
    %cst_35 = arith.constant 1.000000e+00 : f32
    %130 = vector.broadcast %cst_35 : f32 to vector<1x192xf32>
    %131 = arith.addf %130, %129 : vector<1x192xf32>
    %132 = arith.divf %130, %131 : vector<1x192xf32>
    %133 = vector.extract_strided_slice %126 {offsets = [0, 192], sizes = [1, 64], strides = [1, 1]} : vector<1x256xf32> to vector<1x64xf32>
    %134 = math.tanh %133 : vector<1x64xf32>
    %135 = vector.extract_strided_slice %132 {offsets = [0, 0], sizes = [1, 64], strides = [1, 1]} : vector<1x192xf32> to vector<1x64xf32>
    %136 = vector.extract_strided_slice %132 {offsets = [0, 64], sizes = [1, 64], strides = [1, 1]} : vector<1x192xf32> to vector<1x64xf32>
    %137 = vector.extract_strided_slice %132 {offsets = [0, 128], sizes = [1, 64], strides = [1, 1]} : vector<1x192xf32> to vector<1x64xf32>
    %138 = arith.mulf %136, %117 : vector<1x64xf32>
    %139 = arith.mulf %135, %134 : vector<1x64xf32>
    %140 = arith.addf %138, %139 : vector<1x64xf32>
    %141 = math.tanh %140 : vector<1x64xf32>
    %142 = arith.mulf %137, %141 : vector<1x64xf32>
    %143 = vector.extract_strided_slice %142 {offsets = [0, 0], sizes = [1, 32], strides = [1, 1]} : vector<1x64xf32> to vector<1x32xf32>
    %c5_36 = arith.constant 5 : index
    %c0_37 = arith.constant 0 : index
    %144 = vector.load %arg7[%c5_36, %c0_37] : memref<8x32xf32, #tpu.memory_space<vmem>>, vector<1x32xf32>
    tpu.vector_store %arg7[%c5_36, %c0_37], %143 {strides = array<i32>} : memref<8x32xf32, #tpu.memory_space<vmem>>, vector<1x32xf32>,
    %145 = vector.extract_strided_slice %142 {offsets = [0, 32], sizes = [1, 32], strides = [1, 1]} : vector<1x64xf32> to vector<1x32xf32>
    %c2_38 = arith.constant 2 : index
    %c0_39 = arith.constant 0 : index
    %146 = vector.load %arg8[%c2_38, %c0_39] : memref<8x32xf32, #tpu.memory_space<vmem>>, vector<1x32xf32>
    tpu.vector_store %arg8[%c2_38, %c0_39], %145 {strides = array<i32>} : memref<8x32xf32, #tpu.memory_space<vmem>>, vector<1x32xf32>,
    %147 = vector.extract_strided_slice %5 {offsets = [6, 0], sizes = [1, 256], strides = [1, 1]} : vector<8x256xf32> to vector<1x256xf32>
    %cst_40 = arith.constant dense<0.000000e+00> : vector<1x256xf32>
    %148 = tpu.matmul %142, %6, %cst_40 {dimension_numbers = #tpu.dot_dimension_numbers<[1], [0], [0], [1], [0, 0, 1, 1], [], []>} : vector<1x64xf32>, vector<64x256xf32>, vector<1x256xf32> -> vector<1x256xf32>
    %149 = arith.addf %147, %148 : vector<1x256xf32>
    %150 = vector.extract_strided_slice %149 {offsets = [0, 0], sizes = [1, 192], strides = [1, 1]} : vector<1x256xf32> to vector<1x192xf32>
    %151 = arith.negf %150 : vector<1x192xf32>
    %152 = math.exp %151 : vector<1x192xf32>
    %cst_41 = arith.constant 1.000000e+00 : f32
    %153 = vector.broadcast %cst_41 : f32 to vector<1x192xf32>
    %154 = arith.addf %153, %152 : vector<1x192xf32>
    %155 = arith.divf %153, %154 : vector<1x192xf32>
    %156 = vector.extract_strided_slice %149 {offsets = [0, 192], sizes = [1, 64], strides = [1, 1]} : vector<1x256xf32> to vector<1x64xf32>
    %157 = math.tanh %156 : vector<1x64xf32>
    %158 = vector.extract_strided_slice %155 {offsets = [0, 0], sizes = [1, 64], strides = [1, 1]} : vector<1x192xf32> to vector<1x64xf32>
    %159 = vector.extract_strided_slice %155 {offsets = [0, 64], sizes = [1, 64], strides = [1, 1]} : vector<1x192xf32> to vector<1x64xf32>
    %160 = vector.extract_strided_slice %155 {offsets = [0, 128], sizes = [1, 64], strides = [1, 1]} : vector<1x192xf32> to vector<1x64xf32>
    %161 = arith.mulf %159, %140 : vector<1x64xf32>
    %162 = arith.mulf %158, %157 : vector<1x64xf32>
    %163 = arith.addf %161, %162 : vector<1x64xf32>
    %164 = math.tanh %163 : vector<1x64xf32>
    %165 = arith.mulf %160, %164 : vector<1x64xf32>
    %166 = vector.extract_strided_slice %165 {offsets = [0, 0], sizes = [1, 32], strides = [1, 1]} : vector<1x64xf32> to vector<1x32xf32>
    %c6_42 = arith.constant 6 : index
    %c0_43 = arith.constant 0 : index
    %167 = vector.load %arg7[%c6_42, %c0_43] : memref<8x32xf32, #tpu.memory_space<vmem>>, vector<1x32xf32>
    tpu.vector_store %arg7[%c6_42, %c0_43], %166 {strides = array<i32>} : memref<8x32xf32, #tpu.memory_space<vmem>>, vector<1x32xf32>,
    %168 = vector.extract_strided_slice %165 {offsets = [0, 32], sizes = [1, 32], strides = [1, 1]} : vector<1x64xf32> to vector<1x32xf32>
    %c1_44 = arith.constant 1 : index
    %c0_45 = arith.constant 0 : index
    %169 = vector.load %arg8[%c1_44, %c0_45] : memref<8x32xf32, #tpu.memory_space<vmem>>, vector<1x32xf32>
    tpu.vector_store %arg8[%c1_44, %c0_45], %168 {strides = array<i32>} : memref<8x32xf32, #tpu.memory_space<vmem>>, vector<1x32xf32>,
    %170 = vector.extract_strided_slice %5 {offsets = [7, 0], sizes = [1, 256], strides = [1, 1]} : vector<8x256xf32> to vector<1x256xf32>
    %cst_46 = arith.constant dense<0.000000e+00> : vector<1x256xf32>
    %171 = tpu.matmul %165, %6, %cst_46 {dimension_numbers = #tpu.dot_dimension_numbers<[1], [0], [0], [1], [0, 0, 1, 1], [], []>} : vector<1x64xf32>, vector<64x256xf32>, vector<1x256xf32> -> vector<1x256xf32>
    %172 = arith.addf %170, %171 : vector<1x256xf32>
    %173 = vector.extract_strided_slice %172 {offsets = [0, 0], sizes = [1, 192], strides = [1, 1]} : vector<1x256xf32> to vector<1x192xf32>
    %174 = arith.negf %173 : vector<1x192xf32>
    %175 = math.exp %174 : vector<1x192xf32>
    %cst_47 = arith.constant 1.000000e+00 : f32
    %176 = vector.broadcast %cst_47 : f32 to vector<1x192xf32>
    %177 = arith.addf %176, %175 : vector<1x192xf32>
    %178 = arith.divf %176, %177 : vector<1x192xf32>
    %179 = vector.extract_strided_slice %172 {offsets = [0, 192], sizes = [1, 64], strides = [1, 1]} : vector<1x256xf32> to vector<1x64xf32>
    %180 = math.tanh %179 : vector<1x64xf32>
    %181 = vector.extract_strided_slice %178 {offsets = [0, 0], sizes = [1, 64], strides = [1, 1]} : vector<1x192xf32> to vector<1x64xf32>
    %182 = vector.extract_strided_slice %178 {offsets = [0, 64], sizes = [1, 64], strides = [1, 1]} : vector<1x192xf32> to vector<1x64xf32>
    %183 = vector.extract_strided_slice %178 {offsets = [0, 128], sizes = [1, 64], strides = [1, 1]} : vector<1x192xf32> to vector<1x64xf32>
    %184 = arith.mulf %182, %163 : vector<1x64xf32>
    %185 = arith.mulf %181, %180 : vector<1x64xf32>
    %186 = arith.addf %184, %185 : vector<1x64xf32>
    %187 = math.tanh %186 : vector<1x64xf32>
    %188 = arith.mulf %183, %187 : vector<1x64xf32>
    %189 = vector.extract_strided_slice %188 {offsets = [0, 0], sizes = [1, 32], strides = [1, 1]} : vector<1x64xf32> to vector<1x32xf32>
    %c7_48 = arith.constant 7 : index
    %c0_49 = arith.constant 0 : index
    %190 = vector.load %arg7[%c7_48, %c0_49] : memref<8x32xf32, #tpu.memory_space<vmem>>, vector<1x32xf32>
    tpu.vector_store %arg7[%c7_48, %c0_49], %189 {strides = array<i32>} : memref<8x32xf32, #tpu.memory_space<vmem>>, vector<1x32xf32>,
    %191 = vector.extract_strided_slice %188 {offsets = [0, 32], sizes = [1, 32], strides = [1, 1]} : vector<1x64xf32> to vector<1x32xf32>
    %c0_50 = arith.constant 0 : index
    %c0_51 = arith.constant 0 : index
    %192 = vector.load %arg8[%c0_50, %c0_51] : memref<8x32xf32, #tpu.memory_space<vmem>>, vector<1x32xf32>
    tpu.vector_store %arg8[%c0_50, %c0_51], %191 {strides = array<i32>} : memref<8x32xf32, #tpu.memory_space<vmem>>, vector<1x32xf32>,
    %c0_52 = arith.constant 0 : index
    %c0_53 = arith.constant 0 : index
    %193 = vector.load %arg7[%c0_52, %c0_53] : memref<8x32xf32, #tpu.memory_space<vmem>>, vector<8x32xf32>
    %c0_54 = arith.constant 0 : index
    %c0_55 = arith.constant 0 : index
    %194 = vector.load %arg8[%c0_54, %c0_55] : memref<8x32xf32, #tpu.memory_space<vmem>>, vector<8x32xf32>
    %195 = tpu.concatenate %193, %194 in 1 : vector<8x32xf32>, vector<8x32xf32> -> vector<8x64xf32>
    %cst_56 = arith.constant dense<0.000000e+00> : vector<1x8xf32>
    %196 = tpu.matmul %188, %195, %cst_56 {dimension_numbers = #tpu.dot_dimension_numbers<[1], [1], [0], [0], [0, 0, 1, 0], [], []>} : vector<1x64xf32>, vector<8x64xf32>, vector<1x8xf32> -> vector<1x8xf32>
    %cst_57 = arith.constant dense<0xFF800000> : vector<1xf32>
    %197 = vector.multi_reduction <maximumf>, %196, %cst_57 [1] : vector<1x8xf32> to vector<1xf32>
    %198 = vector.shape_cast %197 : vector<1xf32> to vector<1x1xf32>
    %199 = vector.broadcast %198 : vector<1x1xf32> to vector<1x8xf32>
    %200 = arith.subf %196, %199 : vector<1x8xf32>
    %201 = math.exp %200 : vector<1x8xf32>
    %cst_58 = arith.constant dense<0.000000e+00> : vector<1xf32>
    %202 = vector.multi_reduction <add>, %201, %cst_58 [1] : vector<1x8xf32> to vector<1xf32>
    %203 = vector.shape_cast %202 : vector<1xf32> to vector<1x1xf32>
    %204 = vector.broadcast %203 : vector<1x1xf32> to vector<1x8xf32>
    %205 = arith.divf %201, %204 : vector<1x8xf32>
    %c0_59 = arith.constant 0 : index
    %c0_60 = arith.constant 0 : index
    %206 = vector.load %arg6[%c0_59, %c0_60] : memref<1x8xf32, #tpu.memory_space<vmem>>, vector<1x8xf32>
    tpu.vector_store %arg6[%c0_59, %c0_60], %205 {strides = array<i32>} : memref<1x8xf32, #tpu.memory_space<vmem>>, vector<1x8xf32>,
    return
  }
}

</mosaic_0001>

<llo_original>
// kernel: tpu_custom_call.1
$region0: #{tpu_custom_call.1}
  #allocation0 [shape = 'u32[]', space=smem, size = 0x4, offset = 0x4, fixed_abs, tag = 'smem constant byte address 0x4 - core index']
  #allocation1 [shape = 'u32[144,128]{1,0:T(1,128)}', space=vmem, size = 0x12000, scoped, tag = 'internal scratch']
  #allocation2 [shape = 'f32[8,32]{1,0:T(8,128)}', space=vmem, size = 0x1000, scoped, tag = 'scratch operand']
  #allocation3 [shape = 'f32[8,32]{1,0:T(8,128)}', space=vmem, size = 0x1000, scoped, tag = 'scratch operand']
  %s0 = inlined_call_operand.hbm [shape: f32[8,64], index: 0, kind: input, shape index: {}]
  %s1 = inlined_call_operand.hbm [shape: f32[64,256], index: 1, kind: input, shape index: {}]
  %s2 = inlined_call_operand.hbm [shape: f32[64,256], index: 2, kind: input, shape index: {}]
  %s3 = inlined_call_operand.vmem [shape: f32[1,256], index: 3, kind: input, shape index: {}]
  %s4 = inlined_call_operand.vmem [shape: f32[1,64], index: 4, kind: input, shape index: {}]
  %s5 = inlined_call_operand.vmem [shape: f32[1,64], index: 5, kind: input, shape index: {}]
  %s6 = inlined_call_operand.hbm [shape: f32[1,8], index: 6, kind: output, shape index: {}]
  %s7 = sld [smem:[#allocation0]]
  $region46: #{tpu_custom_call.1} parent=0
    _
  %s9 = ssub.s32 1, %s7
  %s10 = scalar_select 0, %s9, %s7
  $region1: #{tpu_custom_call.1} parent=0
    #allocation4 [shape = 'u8[4096]{0}', space=vmem, size = 0x1000, scoped, tag = 'input window, operand 0, single buffered']
    #allocation5 [shape = 's32[1]{0}', space=sflag, size = 0x4, scoped, tag = 'scoped memory for tpu_custom_call.1']
    #allocation6 [shape = 's32[1]{0}', space=sflag, size = 0x4, scoped, tag = 'scoped memory for tpu_custom_call.1']
    #allocation7 [shape = 'u8[65536]{0}', space=vmem, size = 0x10000, scoped, tag = 'input window, operand 1, single buffered']
    #allocation8 [shape = 's32[1]{0}', space=sflag, size = 0x4, scoped, tag = 'scoped memory for tpu_custom_call.1']
    #allocation9 [shape = 'u8[65536]{0}', space=vmem, size = 0x10000, scoped, tag = 'input window, operand 2, single buffered']
    #allocation10 [shape = 'u8[512]{0}', space=vmem, size = 0x400, scoped, tag = 'output window, operand 0, single buffered']
    %11 = vsyncpa [#allocation5], 0
    %12 = vsyncpa [#allocation8], 0
    %13 = vsyncpa [#allocation6], 0
    // Predicated region
    $region2: #{tpu_custom_call.1} parent=1 // pred_check
      _
    $region3: #{tpu_custom_call.1} parent=1 // pred_check_branch
      %15 = sbr.rel (0) target = $region5
    $region4: #{tpu_custom_call.1} parent=1 // pred_region
      %s17 = ssub.s32 128, 128
      %18 = vsyncadd [#allocation5], %s17
      %s20 = sshll.u32 [#allocation4], 4
      %s21 = int_to_ptr.vmem [resolvable:$true] %s20
      %23 = dma.hbm_to_vmem [thread:$0]  %s0, 128, %s21, [#allocation5]
    $region5: #{tpu_custom_call.1} parent=1 // pred_fallthru
      _
    // Predicated region
    $region6: #{tpu_custom_call.1} parent=1 // pred_check
      _
    $region7: #{tpu_custom_call.1} parent=1 // pred_check_branch
      %25 = sbr.rel (0) target = $region9
    $region8: #{tpu_custom_call.1} parent=1 // pred_region
      %s27 = ssub.s32 2048, 2048
      %28 = vsyncadd [#allocation8], %s27
      %s29 = sshll.u32 [#allocation7], 4
      %s30 = int_to_ptr.vmem [resolvable:$true] %s29
      %35 = dma.hbm_to_vmem [thread:$0]  %s1, 2048, %s30, [#allocation8], 256, 256, 16
    $region9: #{tpu_custom_call.1} parent=1 // pred_fallthru
      _
    // Predicated region
    $region10: #{tpu_custom_call.1} parent=1 // pred_check
      _
    $region11: #{tpu_custom_call.1} parent=1 // pred_check_branch
      %37 = sbr.rel (0) target = $region13
    $region12: #{tpu_custom_call.1} parent=1 // pred_region
      %s39 = ssub.s32 2048, 2048
      %40 = vsyncadd [#allocation8], %s39
      %s41 = sshll.u32 [#allocation9], 4
      %s42 = int_to_ptr.vmem [resolvable:$true] %s41
      %47 = dma.hbm_to_vmem [thread:$0]  %s2, 2048, %s42, [#allocation8], 256, 256, 16
    $region13: #{tpu_custom_call.1} parent=1 // pred_fallthru
      _
    // Predicated region
    $region14: #{tpu_custom_call.1} parent=1 // pred_check
      _
    $region15: #{tpu_custom_call.1} parent=1 // pred_check_branch
      %49 = sbr.rel (0) target = $region17
    $region16: #{tpu_custom_call.1} parent=1 // pred_region
      _
    $region17: #{tpu_custom_call.1} parent=1 // pred_fallthru
      _
    // Predicated region
    $region18: #{tpu_custom_call.1} parent=1 // pred_check
      _
    $region19: #{tpu_custom_call.1} parent=1 // pred_check_branch
      %51 = sbr.rel (0) target = $region21
    $region20: #{tpu_custom_call.1} parent=1 // pred_region
      _
    $region21: #{tpu_custom_call.1} parent=1 // pred_fallthru
      _
    // Predicated region
    $region22: #{tpu_custom_call.1} parent=1 // pred_check
      _
    $region23: #{tpu_custom_call.1} parent=1 // pred_check_branch
      %53 = sbr.rel (0) target = $region25
    $region24: #{tpu_custom_call.1} parent=1 // pred_region
      _
    $region25: #{tpu_custom_call.1} parent=1 // pred_fallthru
      _
    // Predicated region
    $region26: #{tpu_custom_call.1} parent=1 // pred_check
      _
    $region27: #{tpu_custom_call.1} parent=1 // pred_check_branch
      %55 = sbr.rel (0) target = $region29
    $region28: #{tpu_custom_call.1} parent=1 // pred_region
      %56 = dma.done [#allocation5], 128
    $region29: #{tpu_custom_call.1} parent=1 // pred_fallthru
      _
    // Predicated region
    $region30: #{tpu_custom_call.1} parent=1 // pred_check
      _
    $region31: #{tpu_custom_call.1} parent=1 // pred_check_branch
      %58 = sbr.rel (0) target = $region33
    $region32: #{tpu_custom_call.1} parent=1 // pred_region
      %59 = dma.done [#allocation8], 2048
    $region33: #{tpu_custom_call.1} parent=1 // pred_fallthru
      _
    // Predicated region
    $region34: #{tpu_custom_call.1} parent=1 // pred_check
      _
    $region35: #{tpu_custom_call.1} parent=1 // pred_check_branch
      %61 = sbr.rel (0) target = $region37
    $region36: #{tpu_custom_call.1} parent=1 // pred_region
      %62 = dma.done [#allocation8], 2048
    $region37: #{tpu_custom_call.1} parent=1 // pred_fallthru
      _
    %v63 = vld [vmem:[#allocation4] sm:$0xff]
    %v64 = vld [vmem:[#allocation7] sm:$0xff]
    %v65 = vld [vmem:[#allocation7 + $0x8] sm:$0xff]
    %v66 = vld [vmem:[#allocation7 + $0x10] sm:$0xff]
    %v67 = vld [vmem:[#allocation7 + $0x18] sm:$0xff]
    %v68 = vld [vmem:[#allocation7 + $0x20] sm:$0xff]
    %v69 = vld [vmem:[#allocation7 + $0x28] sm:$0xff]
    %v70 = vld [vmem:[#allocation7 + $0x30] sm:$0xff]
    %v71 = vld [vmem:[#allocation7 + $0x38] sm:$0xff]
    %v72 = vld [vmem:[#allocation7 + $0x40] sm:$0xff]
    %v73 = vld [vmem:[#allocation7 + $0x48] sm:$0xff]
    %v74 = vld [vmem:[#allocation7 + $0x50] sm:$0xff]
    %v75 = vld [vmem:[#allocation7 + $0x58] sm:$0xff]
    %v76 = vld [vmem:[#allocation7 + $0x60] sm:$0xff]
    %v77 = vld [vmem:[#allocation7 + $0x68] sm:$0xff]
    %v78 = vld [vmem:[#allocation7 + $0x70] sm:$0xff]
    %v79 = vld [vmem:[#allocation7 + $0x78] sm:$0xff]
    %v80 = vld [vmem:[%s3] sm:$0x3]
    %v82 = vlaneseq
    %v83 = vshrl.u32 %v82, 7
    %v84 = vsub.s32 0, %v83
    %v85 = vrot.slane %v80, %v84
    %v86 = vlaneseq
    %v87 = vshrl.u32 %v86, 7
    %v88 = vsub.s32 1, %v87
    %v89 = vrot.slane %v80, %v88
    %vm92 = vcmask 523264
    %v94 = vsel %vm92, %v63, 0
    %96 = vmatprep.subr.mxu0 %v65
    %97 = vmatpush1.msra.mxu0 %v64
    %98 = vmatprep.subr.mxu0 %v67
    %99 = vmatpush1.msra.mxu0 %v66
    %100 = vmatprep.subr.mxu0 %v69
    %101 = vmatpush1.msra.mxu0 %v68
    %102 = vmatprep.subr.mxu0 %v71
    %103 = vmatpush1.msra.mxu0 %v70
    %104 = vmatprep.subr.mxu0 %v73
    %105 = vmatpush1.msra.mxu0 %v72
    %106 = vmatprep.subr.mxu0 %v75
    %107 = vmatpush1.msra.mxu0 %v74
    %108 = vmatprep.subr.mxu0 %v77
    %109 = vmatpush1.msra.mxu0 %v76
    %110 = vmatprep.subr.mxu0 %v79
    %111 = vmatpush1.msra.mxu0 %v78
    %112 = vmatprep.subr.mxu0 0.0
    %113 = vmatpush1.msra.mxu0 0.0
    %114 = vmatprep.subr.mxu0 0.0
    %115 = vmatpush1.msra.mxu0 0.0
    %116 = vmatprep.subr.mxu0 0.0
    %117 = vmatpush1.msra.mxu0 0.0
    %118 = vmatprep.subr.mxu0 0.0
    %119 = vmatpush1.msra.mxu0 0.0
    %120 = vmatprep.subr.mxu0 0.0
    %121 = vmatpush1.msra.mxu0 0.0
    %122 = vmatprep.subr.mxu0 0.0
    %123 = vmatpush1.msra.mxu0 0.0
    %124 = vmatprep.subr.mxu0 0.0
    %125 = vmatpush1.msra.mxu0 0.0
    %126 = vmatprep.subr.mxu0 0.0
    %127 = vmatpush1.msra.mxu0 0.0
    %128 = vmatprep.subr.mxu0 0.0
    %129 = vmatpush1.msra.mxu0 0.0
    %130 = vmatprep.subr.mxu0 0.0
    %131 = vmatpush1.msra.mxu0 0.0
    %132 = vmatprep.subr.mxu0 0.0
    %133 = vmatpush1.msra.mxu0 0.0
    %134 = vmatprep.subr.mxu0 0.0
    %135 = vmatpush1.msra.mxu0 0.0
    %136 = vmatprep.subr.mxu0 0.0
    %137 = vmatpush1.msra.mxu0 0.0
    %138 = vmatprep.subr.mxu0 0.0
    %139 = vmatpush1.msra.mxu0 0.0
    %140 = vmatprep.subr.mxu0 0.0
    %141 = vmatpush1.msra.mxu0 0.0
    %142 = vmatprep.subr.mxu0 0.0
    %143 = vmatpush1.msra.mxu0 0.0
    %144 = vmatprep.subr.mxu0 0.0
    %145 = vmatpush1.msra.mxu0 0.0
    %146 = vmatprep.subr.mxu0 0.0
    %147 = vmatpush1.msra.mxu0 0.0
    %148 = vmatprep.subr.mxu0 0.0
    %149 = vmatpush1.msra.mxu0 0.0
    %150 = vmatprep.subr.mxu0 0.0
    %151 = vmatpush1.msra.mxu0 0.0
    %152 = vmatprep.subr.mxu0 0.0
    %153 = vmatpush1.msra.mxu0 0.0
    %154 = vmatprep.subr.mxu0 0.0
    %155 = vmatpush1.msra.mxu0 0.0
    %156 = vmatprep.subr.mxu0 0.0
    %157 = vmatpush1.msra.mxu0 0.0
    %158 = vmatprep.subr.mxu0 0.0
    %159 = vmatpush1.msra.mxu0 0.0
    %160 = vmatprep.mubr.f32.mxu0 0.0
    %161 = vmatmul.mubr.f32.gmra.mrb[0].mxu0 %v94
    %v162 = vpop.f32.mrb[0].mxu0
    %v163 = vadd.f32 %v85, %v162
    %v164 = vpop.f32.mrb[0].mxu0
    %v165 = vadd.f32 %v89, %v164
    %166 = vdwg.mxu0
    %v167 = vld [vmem:[#allocation9] sm:$0xff]
    %v168 = vld [vmem:[#allocation9 + $0x8] sm:$0xff]
    %v169 = vld [vmem:[#allocation9 + $0x10] sm:$0xff]
    %v170 = vld [vmem:[#allocation9 + $0x18] sm:$0xff]
    %v171 = vld [vmem:[#allocation9 + $0x20] sm:$0xff]
    %v172 = vld [vmem:[#allocation9 + $0x28] sm:$0xff]
    %v173 = vld [vmem:[#allocation9 + $0x30] sm:$0xff]
    %v174 = vld [vmem:[#allocation9 + $0x38] sm:$0xff]
    %v175 = vld [vmem:[#allocation9 + $0x40] sm:$0xff]
    %v176 = vld [vmem:[#allocation9 + $0x48] sm:$0xff]
    %v177 = vld [vmem:[#allocation9 + $0x50] sm:$0xff]
    %v178 = vld [vmem:[#allocation9 + $0x58] sm:$0xff]
    %v179 = vld [vmem:[#allocation9 + $0x60] sm:$0xff]
    %v180 = vld [vmem:[#allocation9 + $0x68] sm:$0xff]
    %v181 = vld [vmem:[#allocation9 + $0x70] sm:$0xff]
    %v182 = vld [vmem:[#allocation9 + $0x78] sm:$0xff]
    %v183 = vld [vmem:[%s4] sm:$0x1]
    %v184 = vld [vmem:[%s5] sm:$0x1]
    %v186 = vsel %vm92, %v183, 0
    %188 = vmatprep.subr.mxu0 %v168
    %189 = vmatpush1.msra.mxu0 %v167
    %190 = vmatprep.subr.mxu0 %v170
    %191 = vmatpush1.msra.mxu0 %v169
    %192 = vmatprep.subr.mxu0 %v172
    %193 = vmatpush1.msra.mxu0 %v171
    %194 = vmatprep.subr.mxu0 %v174
    %195 = vmatpush1.msra.mxu0 %v173
    %196 = vmatprep.subr.mxu0 %v176
    %197 = vmatpush1.msra.mxu0 %v175
    %198 = vmatprep.subr.mxu0 %v178
    %199 = vmatpush1.msra.mxu0 %v177
    %200 = vmatprep.subr.mxu0 %v180
    %201 = vmatpush1.msra.mxu0 %v179
    %202 = vmatprep.subr.mxu0 %v182
    %203 = vmatpush1.msra.mxu0 %v181
    %204 = vmatprep.subr.mxu0 0.0
    %205 = vmatpush1.msra.mxu0 0.0
    %206 = vmatprep.subr.mxu0 0.0
    %207 = vmatpush1.msra.mxu0 0.0
    %208 = vmatprep.subr.mxu0 0.0
    %209 = vmatpush1.msra.mxu0 0.0
    %210 = vmatprep.subr.mxu0 0.0
    %211 = vmatpush1.msra.mxu0 0.0
    %212 = vmatprep.subr.mxu0 0.0
    %213 = vmatpush1.msra.mxu0 0.0
    %214 = vmatprep.subr.mxu0 0.0
    %215 = vmatpush1.msra.mxu0 0.0
    %216 = vmatprep.subr.mxu0 0.0
    %217 = vmatpush1.msra.mxu0 0.0
    %218 = vmatprep.subr.mxu0 0.0
    %219 = vmatpush1.msra.mxu0 0.0
    %220 = vmatprep.subr.mxu0 0.0
    %221 = vmatpush1.msra.mxu0 0.0
    %222 = vmatprep.subr.mxu0 0.0
    %223 = vmatpush1.msra.mxu0 0.0
    %224 = vmatprep.subr.mxu0 0.0
    %225 = vmatpush1.msra.mxu0 0.0
    %226 = vmatprep.subr.mxu0 0.0
    %227 = vmatpush1.msra.mxu0 0.0
    %228 = vmatprep.subr.mxu0 0.0
    %229 = vmatpush1.msra.mxu0 0.0
    %230 = vmatprep.subr.mxu0 0.0
    %231 = vmatpush1.msra.mxu0 0.0
    %232 = vmatprep.subr.mxu0 0.0
    %233 = vmatpush1.msra.mxu0 0.0
    %234 = vmatprep.subr.mxu0 0.0
    %235 = vmatpush1.msra.mxu0 0.0
    %236 = vmatprep.subr.mxu0 0.0
    %237 = vmatpush1.msra.mxu0 0.0
    %238 = vmatprep.subr.mxu0 0.0
    %239 = vmatpush1.msra.mxu0 0.0
    %240 = vmatprep.subr.mxu0 0.0
    %241 = vmatpush1.msra.mxu0 0.0
    %242 = vmatprep.subr.mxu0 0.0
    %243 = vmatpush1.msra.mxu0 0.0
    %244 = vmatprep.subr.mxu0 0.0
    %245 = vmatpush1.msra.mxu0 0.0
    %246 = vmatprep.subr.mxu0 0.0
    %247 = vmatpush1.msra.mxu0 0.0
    %248 = vmatprep.subr.mxu0 0.0
    %249 = vmatpush1.msra.mxu0 0.0
    %250 = vmatprep.subr.mxu0 0.0
    %251 = vmatpush1.msra.mxu0 0.0
    %252 = vmatprep.mubr.f32.mxu0 0.0
    %253 = vmatmul.mubr.f32.gmra.mrb[0].mxu0 %v186
    %v254 = vpop.f32.mrb[0].mxu0
    %v255 = vadd.f32 0.0, %v254
    %v256 = vpop.f32.mrb[0].mxu0
    %v257 = vadd.f32 0.0, %v256
    %258 = vdwg.mxu0
    %v259 = vadd.f32 %v163, %v255
    %v260 = vadd.f32 %v165, %v257
    %v261 = vxor.u32 %v259, 2147483648
    %v262 = vxor.u32 %v260, 2147483648
    %v263 = vmul.f32 %v261, 1.442695
    %v264 = vpow.pop %v263
    %v265 = vmul.f32 %v262, 1.442695
    %v266 = vpow.pop %v265
    %v267 = vadd.f32 %v264, 1.0
    %v268 = vadd.f32 %v266, 1.0
    %v269 = vrcp.pop %v267
    %v270 = vmul.f32 1.0, %v269
    %v271 = vrcp.pop %v268
    %v272 = vmul.f32 1.0, %v271
    %v273 = vtanh.pop %v260
    %v275 = vlaneseq
    %v276 = vshrl.u32 %v275, 7
    %v277 = vsub.s32 0, %v276
    %v278 = vrot.slane %v184, %v277
    %279 = vrot.lane.b32.xlu0 %v278, 64
    %v280 = vpop.permute.xlu0 %279
    %v282 = vmul.f32 %v270, %v280
    %284 = vrot.lane.b32.xlu0 %v273, 64
    %v285 = vpop.permute.xlu0 %284
    %v287 = vmul.f32 %v270, %v285
    %289 = vrot.lane.b32.xlu0 %v287, 64
    %v290 = vpop.permute.xlu0 %289
    %v292 = vadd.f32 %v282, %v290
    %v293 = vtanh.pop %v292
    %295 = vrot.lane.b32.xlu0 %v293, 64
    %v296 = vpop.permute.xlu0 %295
    %v298 = vmul.f32 %v272, %v296
    %vm299 = vcmask 253952
    %300 = vst.msk [vmem:[#allocation2] sm:$0x1] %vm299, %v298
    %302 = vrot.lane.b32.xlu0 %v298, 96
    %v303 = vpop.permute.xlu0 %302
    %305 = vst.msk [vmem:[#allocation3 + $0x7] sm:$0x1] %vm299, %v303
    %v306 = vsel %vm92, %v298, 0
    %308 = vmatprep.subr.mxu0 %v168
    %309 = vmatpush1.msra.mxu0 %v167
    %310 = vmatprep.subr.mxu0 %v170
    %311 = vmatpush1.msra.mxu0 %v169
    %312 = vmatprep.subr.mxu0 %v172
    %313 = vmatpush1.msra.mxu0 %v171
    %314 = vmatprep.subr.mxu0 %v174
    %315 = vmatpush1.msra.mxu0 %v173
    %316 = vmatprep.subr.mxu0 %v176
    %317 = vmatpush1.msra.mxu0 %v175
    %318 = vmatprep.subr.mxu0 %v178
    %319 = vmatpush1.msra.mxu0 %v177
    %320 = vmatprep.subr.mxu0 %v180
    %321 = vmatpush1.msra.mxu0 %v179
    %322 = vmatprep.subr.mxu0 %v182
    %323 = vmatpush1.msra.mxu0 %v181
    %324 = vmatprep.subr.mxu0 0.0
    %325 = vmatpush1.msra.mxu0 0.0
    %326 = vmatprep.subr.mxu0 0.0
    %327 = vmatpush1.msra.mxu0 0.0
    %328 = vmatprep.subr.mxu0 0.0
    %329 = vmatpush1.msra.mxu0 0.0
    %330 = vmatprep.subr.mxu0 0.0
    %331 = vmatpush1.msra.mxu0 0.0
    %332 = vmatprep.subr.mxu0 0.0
    %333 = vmatpush1.msra.mxu0 0.0
    %334 = vmatprep.subr.mxu0 0.0
    %335 = vmatpush1.msra.mxu0 0.0
    %336 = vmatprep.subr.mxu0 0.0
    %337 = vmatpush1.msra.mxu0 0.0
    %338 = vmatprep.subr.mxu0 0.0
    %339 = vmatpush1.msra.mxu0 0.0
    %340 = vmatprep.subr.mxu0 0.0
    %341 = vmatpush1.msra.mxu0 0.0
    %342 = vmatprep.subr.mxu0 0.0
    %343 = vmatpush1.msra.mxu0 0.0
    %344 = vmatprep.subr.mxu0 0.0
    %345 = vmatpush1.msra.mxu0 0.0
    %346 = vmatprep.subr.mxu0 0.0
    %347 = vmatpush1.msra.mxu0 0.0
    %348 = vmatprep.subr.mxu0 0.0
    %349 = vmatpush1.msra.mxu0 0.0
    %350 = vmatprep.subr.mxu0 0.0
    %351 = vmatpush1.msra.mxu0 0.0
    %352 = vmatprep.subr.mxu0 0.0
    %353 = vmatpush1.msra.mxu0 0.0
    %354 = vmatprep.subr.mxu0 0.0
    %355 = vmatpush1.msra.mxu0 0.0
    %356 = vmatprep.subr.mxu0 0.0
    %357 = vmatpush1.msra.mxu0 0.0
    %358 = vmatprep.subr.mxu0 0.0
    %359 = vmatpush1.msra.mxu0 0.0
    %360 = vmatprep.subr.mxu0 0.0
    %361 = vmatpush1.msra.mxu0 0.0
    %362 = vmatprep.subr.mxu0 0.0
    %363 = vmatpush1.msra.mxu0 0.0
    %364 = vmatprep.subr.mxu0 0.0
    %365 = vmatpush1.msra.mxu0 0.0
    %366 = vmatprep.subr.mxu0 0.0
    %367 = vmatpush1.msra.mxu0 0.0
    %368 = vmatprep.subr.mxu0 0.0
    %369 = vmatpush1.msra.mxu0 0.0
    %370 = vmatprep.subr.mxu0 0.0
    %371 = vmatpush1.msra.mxu0 0.0
    %372 = vmatprep.mubr.f32.mxu0 0.0
    %373 = vmatmul.mubr.f32.gmra.mrb[0].mxu0 %v306
    %v374 = vpop.f32.mrb[0].mxu0
    %v375 = vadd.f32 0.0, %v374
    %v376 = vpop.f32.mrb[0].mxu0
    %v377 = vadd.f32 0.0, %v376
    %378 = vdwg.mxu0
    %v381 = vrot.slane %v375, 7
    %v382 = vrot.slane %v377, 7
    %v385 = vadd.f32 %v163, %v381
    %v386 = vadd.f32 %v165, %v382
    %v387 = vxor.u32 %v385, 2147483648
    %v388 = vxor.u32 %v386, 2147483648
    %v389 = vmul.f32 %v387, 1.442695
    %v390 = vpow.pop %v389
    %v391 = vmul.f32 %v388, 1.442695
    %v392 = vpow.pop %v391
    %v393 = vadd.f32 %v390, 1.0
    %v394 = vadd.f32 %v392, 1.0
    %v395 = vrcp.pop %v393
    %v396 = vmul.f32 1.0, %v395
    %v397 = vrcp.pop %v394
    %v398 = vmul.f32 1.0, %v397
    %v399 = vtanh.pop %v386
    %v401 = vrot.slane %v292, 7
    %v403 = vmul.f32 %v396, %v401
    %405 = vrot.lane.b32.xlu0 %v399, 64
    %v406 = vpop.permute.xlu0 %405
    %v408 = vmul.f32 %v396, %v406
    %410 = vrot.lane.b32.xlu0 %v408, 64
    %v411 = vpop.permute.xlu0 %410
    %v413 = vadd.f32 %v403, %v411
    %v414 = vtanh.pop %v413
    %416 = vrot.lane.b32.xlu0 %v414, 64
    %v417 = vpop.permute.xlu0 %416
    %v419 = vmul.f32 %v398, %v417
    %vm420 = vcmask 254977
    %421 = vst.msk [vmem:[#allocation2] sm:$0x2] %vm420, %v419
    %423 = vrot.lane.b32.xlu0 %v419, 96
    %v424 = vpop.permute.xlu0 %423
    %426 = vst.msk [vmem:[#allocation3 + $0x5] sm:$0x2] %vm420, %v424
    %v427 = vrot.slane %v419, 1
    %v428 = vsel %vm92, %v427, 0
    %430 = vmatprep.subr.mxu0 %v168
    %431 = vmatpush1.msra.mxu0 %v167
    %432 = vmatprep.subr.mxu0 %v170
    %433 = vmatpush1.msra.mxu0 %v169
    %434 = vmatprep.subr.mxu0 %v172
    %435 = vmatpush1.msra.mxu0 %v171
    %436 = vmatprep.subr.mxu0 %v174
    %437 = vmatpush1.msra.mxu0 %v173
    %438 = vmatprep.subr.mxu0 %v176
    %439 = vmatpush1.msra.mxu0 %v175
    %440 = vmatprep.subr.mxu0 %v178
    %441 = vmatpush1.msra.mxu0 %v177
    %442 = vmatprep.subr.mxu0 %v180
    %443 = vmatpush1.msra.mxu0 %v179
    %444 = vmatprep.subr.mxu0 %v182
    %445 = vmatpush1.msra.mxu0 %v181
    %446 = vmatprep.subr.mxu0 0.0
    %447 = vmatpush1.msra.mxu0 0.0
    %448 = vmatprep.subr.mxu0 0.0
    %449 = vmatpush1.msra.mxu0 0.0
    %450 = vmatprep.subr.mxu0 0.0
    %451 = vmatpush1.msra.mxu0 0.0
    %452 = vmatprep.subr.mxu0 0.0
    %453 = vmatpush1.msra.mxu0 0.0
    %454 = vmatprep.subr.mxu0 0.0
    %455 = vmatpush1.msra.mxu0 0.0
    %456 = vmatprep.subr.mxu0 0.0
    %457 = vmatpush1.msra.mxu0 0.0
    %458 = vmatprep.subr.mxu0 0.0
    %459 = vmatpush1.msra.mxu0 0.0
    %460 = vmatprep.subr.mxu0 0.0
    %461 = vmatpush1.msra.mxu0 0.0
    %462 = vmatprep.subr.mxu0 0.0
    %463 = vmatpush1.msra.mxu0 0.0
    %464 = vmatprep.subr.mxu0 0.0
    %465 = vmatpush1.msra.mxu0 0.0
    %466 = vmatprep.subr.mxu0 0.0
    %467 = vmatpush1.msra.mxu0 0.0
    %468 = vmatprep.subr.mxu0 0.0
    %469 = vmatpush1.msra.mxu0 0.0
    %470 = vmatprep.subr.mxu0 0.0
    %471 = vmatpush1.msra.mxu0 0.0
    %472 = vmatprep.subr.mxu0 0.0
    %473 = vmatpush1.msra.mxu0 0.0
    %474 = vmatprep.subr.mxu0 0.0
    %475 = vmatpush1.msra.mxu0 0.0
    %476 = vmatprep.subr.mxu0 0.0
    %477 = vmatpush1.msra.mxu0 0.0
    %478 = vmatprep.subr.mxu0 0.0
    %479 = vmatpush1.msra.mxu0 0.0
    %480 = vmatprep.subr.mxu0 0.0
    %481 = vmatpush1.msra.mxu0 0.0
    %482 = vmatprep.subr.mxu0 0.0
    %483 = vmatpush1.msra.mxu0 0.0
    %484 = vmatprep.subr.mxu0 0.0
    %485 = vmatpush1.msra.mxu0 0.0
    %486 = vmatprep.subr.mxu0 0.0
    %487 = vmatpush1.msra.mxu0 0.0
    %488 = vmatprep.subr.mxu0 0.0
    %489 = vmatpush1.msra.mxu0 0.0
    %490 = vmatprep.subr.mxu0 0.0
    %491 = vmatpush1.msra.mxu0 0.0
    %492 = vmatprep.subr.mxu0 0.0
    %493 = vmatpush1.msra.mxu0 0.0
    %494 = vmatprep.mubr.f32.mxu0 0.0
    %495 = vmatmul.mubr.f32.gmra.mrb[0].mxu0 %v428
    %v496 = vpop.f32.mrb[0].mxu0
    %v497 = vadd.f32 0.0, %v496
    %v498 = vpop.f32.mrb[0].mxu0
    %v499 = vadd.f32 0.0, %v498
    %500 = vdwg.mxu0
    %v503 = vrot.slane %v497, 6
    %v504 = vrot.slane %v499, 6
    %v507 = vadd.f32 %v163, %v503
    %v508 = vadd.f32 %v165, %v504
    %v509 = vxor.u32 %v507, 2147483648
    %v510 = vxor.u32 %v508, 2147483648
    %v511 = vmul.f32 %v509, 1.442695
    %v512 = vpow.pop %v511
    %v513 = vmul.f32 %v510, 1.442695
    %v514 = vpow.pop %v513
    %v515 = vadd.f32 %v512, 1.0
    %v516 = vadd.f32 %v514, 1.0
    %v517 = vrcp.pop %v515
    %v518 = vmul.f32 1.0, %v517
    %v519 = vrcp.pop %v516
    %v520 = vmul.f32 1.0, %v519
    %v521 = vtanh.pop %v508
    %v523 = vrot.slane %v413, 7
    %v525 = vmul.f32 %v518, %v523
    %527 = vrot.lane.b32.xlu0 %v521, 64
    %v528 = vpop.permute.xlu0 %527
    %v530 = vmul.f32 %v518, %v528
    %532 = vrot.lane.b32.xlu0 %v530, 64
    %v533 = vpop.permute.xlu0 %532
    %v535 = vadd.f32 %v525, %v533
    %v536 = vtanh.pop %v535
    %538 = vrot.lane.b32.xlu0 %v536, 64
    %v539 = vpop.permute.xlu0 %538
    %v541 = vmul.f32 %v520, %v539
    %vm542 = vcmask 256002
    %543 = vst.msk [vmem:[#allocation2] sm:$0x4] %vm542, %v541
    %545 = vrot.lane.b32.xlu0 %v541, 96
    %v546 = vpop.permute.xlu0 %545
    %548 = vst.msk [vmem:[#allocation3 + $0x3] sm:$0x4] %vm542, %v546
    %v549 = vrot.slane %v541, 2
    %v550 = vsel %vm92, %v549, 0
    %552 = vmatprep.subr.mxu0 %v168
    %553 = vmatpush1.msra.mxu0 %v167
    %554 = vmatprep.subr.mxu0 %v170
    %555 = vmatpush1.msra.mxu0 %v169
    %556 = vmatprep.subr.mxu0 %v172
    %557 = vmatpush1.msra.mxu0 %v171
    %558 = vmatprep.subr.mxu0 %v174
    %559 = vmatpush1.msra.mxu0 %v173
    %560 = vmatprep.subr.mxu0 %v176
    %561 = vmatpush1.msra.mxu0 %v175
    %562 = vmatprep.subr.mxu0 %v178
    %563 = vmatpush1.msra.mxu0 %v177
    %564 = vmatprep.subr.mxu0 %v180
    %565 = vmatpush1.msra.mxu0 %v179
    %566 = vmatprep.subr.mxu0 %v182
    %567 = vmatpush1.msra.mxu0 %v181
    %568 = vmatprep.subr.mxu0 0.0
    %569 = vmatpush1.msra.mxu0 0.0
    %570 = vmatprep.subr.mxu0 0.0
    %571 = vmatpush1.msra.mxu0 0.0
    %572 = vmatprep.subr.mxu0 0.0
    %573 = vmatpush1.msra.mxu0 0.0
    %574 = vmatprep.subr.mxu0 0.0
    %575 = vmatpush1.msra.mxu0 0.0
    %576 = vmatprep.subr.mxu0 0.0
    %577 = vmatpush1.msra.mxu0 0.0
    %578 = vmatprep.subr.mxu0 0.0
    %579 = vmatpush1.msra.mxu0 0.0
    %580 = vmatprep.subr.mxu0 0.0
    %581 = vmatpush1.msra.mxu0 0.0
    %582 = vmatprep.subr.mxu0 0.0
    %583 = vmatpush1.msra.mxu0 0.0
    %584 = vmatprep.subr.mxu0 0.0
    %585 = vmatpush1.msra.mxu0 0.0
    %586 = vmatprep.subr.mxu0 0.0
    %587 = vmatpush1.msra.mxu0 0.0
    %588 = vmatprep.subr.mxu0 0.0
    %589 = vmatpush1.msra.mxu0 0.0
    %590 = vmatprep.subr.mxu0 0.0
    %591 = vmatpush1.msra.mxu0 0.0
    %592 = vmatprep.subr.mxu0 0.0
    %593 = vmatpush1.msra.mxu0 0.0
    %594 = vmatprep.subr.mxu0 0.0
    %595 = vmatpush1.msra.mxu0 0.0
    %596 = vmatprep.subr.mxu0 0.0
    %597 = vmatpush1.msra.mxu0 0.0
    %598 = vmatprep.subr.mxu0 0.0
    %599 = vmatpush1.msra.mxu0 0.0
    %600 = vmatprep.subr.mxu0 0.0
    %601 = vmatpush1.msra.mxu0 0.0
    %602 = vmatprep.subr.mxu0 0.0
    %603 = vmatpush1.msra.mxu0 0.0
    %604 = vmatprep.subr.mxu0 0.0
    %605 = vmatpush1.msra.mxu0 0.0
    %606 = vmatprep.subr.mxu0 0.0
    %607 = vmatpush1.msra.mxu0 0.0
    %608 = vmatprep.subr.mxu0 0.0
    %609 = vmatpush1.msra.mxu0 0.0
    %610 = vmatprep.subr.mxu0 0.0
    %611 = vmatpush1.msra.mxu0 0.0
    %612 = vmatprep.subr.mxu0 0.0
    %613 = vmatpush1.msra.mxu0 0.0
    %614 = vmatprep.subr.mxu0 0.0
    %615 = vmatpush1.msra.mxu0 0.0
    %616 = vmatprep.mubr.f32.mxu0 0.0
    %617 = vmatmul.mubr.f32.gmra.mrb[0].mxu0 %v550
    %v618 = vpop.f32.mrb[0].mxu0
    %v619 = vadd.f32 0.0, %v618
    %v620 = vpop.f32.mrb[0].mxu0
    %v621 = vadd.f32 0.0, %v620
    %622 = vdwg.mxu0
    %v625 = vrot.slane %v619, 5
    %v626 = vrot.slane %v621, 5
    %v629 = vadd.f32 %v163, %v625
    %v630 = vadd.f32 %v165, %v626
    %v631 = vxor.u32 %v629, 2147483648
    %v632 = vxor.u32 %v630, 2147483648
    %v633 = vmul.f32 %v631, 1.442695
    %v634 = vpow.pop %v633
    %v635 = vmul.f32 %v632, 1.442695
    %v636 = vpow.pop %v635
    %v637 = vadd.f32 %v634, 1.0
    %v638 = vadd.f32 %v636, 1.0
    %v639 = vrcp.pop %v637
    %v640 = vmul.f32 1.0, %v639
    %v641 = vrcp.pop %v638
    %v642 = vmul.f32 1.0, %v641
    %v643 = vtanh.pop %v630
    %v645 = vrot.slane %v535, 7
    %v647 = vmul.f32 %v640, %v645
    %649 = vrot.lane.b32.xlu0 %v643, 64
    %v650 = vpop.permute.xlu0 %649
    %v652 = vmul.f32 %v640, %v650
    %654 = vrot.lane.b32.xlu0 %v652, 64
    %v655 = vpop.permute.xlu0 %654
    %v657 = vadd.f32 %v647, %v655
    %v658 = vtanh.pop %v657
    %660 = vrot.lane.b32.xlu0 %v658, 64
    %v661 = vpop.permute.xlu0 %660
    %v663 = vmul.f32 %v642, %v661
    %vm664 = vcmask 257027
    %665 = vst.msk [vmem:[#allocation2] sm:$0x8] %vm664, %v663
    %667 = vrot.lane.b32.xlu0 %v663, 96
    %v668 = vpop.permute.xlu0 %667
    %670 = vst.msk [vmem:[#allocation3 + $0x1] sm:$0x8] %vm664, %v668
    %v671 = vrot.slane %v663, 3
    %v672 = vsel %vm92, %v671, 0
    %674 = vmatprep.subr.mxu0 %v168
    %675 = vmatpush1.msra.mxu0 %v167
    %676 = vmatprep.subr.mxu0 %v170
    %677 = vmatpush1.msra.mxu0 %v169
    %678 = vmatprep.subr.mxu0 %v172
    %679 = vmatpush1.msra.mxu0 %v171
    %680 = vmatprep.subr.mxu0 %v174
    %681 = vmatpush1.msra.mxu0 %v173
    %682 = vmatprep.subr.mxu0 %v176
    %683 = vmatpush1.msra.mxu0 %v175
    %684 = vmatprep.subr.mxu0 %v178
    %685 = vmatpush1.msra.mxu0 %v177
    %686 = vmatprep.subr.mxu0 %v180
    %687 = vmatpush1.msra.mxu0 %v179
    %688 = vmatprep.subr.mxu0 %v182
    %689 = vmatpush1.msra.mxu0 %v181
    %690 = vmatprep.subr.mxu0 0.0
    %691 = vmatpush1.msra.mxu0 0.0
    %692 = vmatprep.subr.mxu0 0.0
    %693 = vmatpush1.msra.mxu0 0.0
    %694 = vmatprep.subr.mxu0 0.0
    %695 = vmatpush1.msra.mxu0 0.0
    %696 = vmatprep.subr.mxu0 0.0
    %697 = vmatpush1.msra.mxu0 0.0
    %698 = vmatprep.subr.mxu0 0.0
    %699 = vmatpush1.msra.mxu0 0.0
    %700 = vmatprep.subr.mxu0 0.0
    %701 = vmatpush1.msra.mxu0 0.0
    %702 = vmatprep.subr.mxu0 0.0
    %703 = vmatpush1.msra.mxu0 0.0
    %704 = vmatprep.subr.mxu0 0.0
    %705 = vmatpush1.msra.mxu0 0.0
    %706 = vmatprep.subr.mxu0 0.0
    %707 = vmatpush1.msra.mxu0 0.0
    %708 = vmatprep.subr.mxu0 0.0
    %709 = vmatpush1.msra.mxu0 0.0
    %710 = vmatprep.subr.mxu0 0.0
    %711 = vmatpush1.msra.mxu0 0.0
    %712 = vmatprep.subr.mxu0 0.0
    %713 = vmatpush1.msra.mxu0 0.0
    %714 = vmatprep.subr.mxu0 0.0
    %715 = vmatpush1.msra.mxu0 0.0
    %716 = vmatprep.subr.mxu0 0.0
    %717 = vmatpush1.msra.mxu0 0.0
    %718 = vmatprep.subr.mxu0 0.0
    %719 = vmatpush1.msra.mxu0 0.0
    %720 = vmatprep.subr.mxu0 0.0
    %721 = vmatpush1.msra.mxu0 0.0
    %722 = vmatprep.subr.mxu0 0.0
    %723 = vmatpush1.msra.mxu0 0.0
    %724 = vmatprep.subr.mxu0 0.0
    %725 = vmatpush1.msra.mxu0 0.0
    %726 = vmatprep.subr.mxu0 0.0
    %727 = vmatpush1.msra.mxu0 0.0
    %728 = vmatprep.subr.mxu0 0.0
    %729 = vmatpush1.msra.mxu0 0.0
    %730 = vmatprep.subr.mxu0 0.0
    %731 = vmatpush1.msra.mxu0 0.0
    %732 = vmatprep.subr.mxu0 0.0
    %733 = vmatpush1.msra.mxu0 0.0
    %734 = vmatprep.subr.mxu0 0.0
    %735 = vmatpush1.msra.mxu0 0.0
    %736 = vmatprep.subr.mxu0 0.0
    %737 = vmatpush1.msra.mxu0 0.0
    %738 = vmatprep.mubr.f32.mxu0 0.0
    %739 = vmatmul.mubr.f32.gmra.mrb[0].mxu0 %v672
    %v740 = vpop.f32.mrb[0].mxu0
    %v741 = vadd.f32 0.0, %v740
    %v742 = vpop.f32.mrb[0].mxu0
    %v743 = vadd.f32 0.0, %v742
    %744 = vdwg.mxu0
    %v747 = vrot.slane %v741, 4
    %v748 = vrot.slane %v743, 4
    %v751 = vadd.f32 %v163, %v747
    %v752 = vadd.f32 %v165, %v748
    %v753 = vxor.u32 %v751, 2147483648
    %v754 = vxor.u32 %v752, 2147483648
    %v755 = vmul.f32 %v753, 1.442695
    %v756 = vpow.pop %v755
    %v757 = vmul.f32 %v754, 1.442695
    %v758 = vpow.pop %v757
    %v759 = vadd.f32 %v756, 1.0
    %v760 = vadd.f32 %v758, 1.0
    %v761 = vrcp.pop %v759
    %v762 = vmul.f32 1.0, %v761
    %v763 = vrcp.pop %v760
    %v764 = vmul.f32 1.0, %v763
    %v765 = vtanh.pop %v752
    %v767 = vrot.slane %v657, 7
    %v769 = vmul.f32 %v762, %v767
    %771 = vrot.lane.b32.xlu0 %v765, 64
    %v772 = vpop.permute.xlu0 %771
    %v774 = vmul.f32 %v762, %v772
    %776 = vrot.lane.b32.xlu0 %v774, 64
    %v777 = vpop.permute.xlu0 %776
    %v779 = vadd.f32 %v769, %v777
    %v780 = vtanh.pop %v779
    %782 = vrot.lane.b32.xlu0 %v780, 64
    %v783 = vpop.permute.xlu0 %782
    %v785 = vmul.f32 %v764, %v783
    %vm786 = vcmask 258052
    %787 = vst.msk [vmem:[#allocation2] sm:$0x10] %vm786, %v785
    %789 = vrot.lane.b32.xlu0 %v785, 96
    %v790 = vpop.permute.xlu0 %789
    %792 = vst.msk [vmem:[#allocation3 - $0x1] sm:$0x10] %vm786, %v790
    %v793 = vrot.slane %v785, 4
    %v794 = vsel %vm92, %v793, 0
    %796 = vmatprep.subr.mxu0 %v168
    %797 = vmatpush1.msra.mxu0 %v167
    %798 = vmatprep.subr.mxu0 %v170
    %799 = vmatpush1.msra.mxu0 %v169
    %800 = vmatprep.subr.mxu0 %v172
    %801 = vmatpush1.msra.mxu0 %v171
    %802 = vmatprep.subr.mxu0 %v174
    %803 = vmatpush1.msra.mxu0 %v173
    %804 = vmatprep.subr.mxu0 %v176
    %805 = vmatpush1.msra.mxu0 %v175
    %806 = vmatprep.subr.mxu0 %v178
    %807 = vmatpush1.msra.mxu0 %v177
    %808 = vmatprep.subr.mxu0 %v180
    %809 = vmatpush1.msra.mxu0 %v179
    %810 = vmatprep.subr.mxu0 %v182
    %811 = vmatpush1.msra.mxu0 %v181
    %812 = vmatprep.subr.mxu0 0.0
    %813 = vmatpush1.msra.mxu0 0.0
    %814 = vmatprep.subr.mxu0 0.0
    %815 = vmatpush1.msra.mxu0 0.0
    %816 = vmatprep.subr.mxu0 0.0
    %817 = vmatpush1.msra.mxu0 0.0
    %818 = vmatprep.subr.mxu0 0.0
    %819 = vmatpush1.msra.mxu0 0.0
    %820 = vmatprep.subr.mxu0 0.0
    %821 = vmatpush1.msra.mxu0 0.0
    %822 = vmatprep.subr.mxu0 0.0
    %823 = vmatpush1.msra.mxu0 0.0
    %824 = vmatprep.subr.mxu0 0.0
    %825 = vmatpush1.msra.mxu0 0.0
    %826 = vmatprep.subr.mxu0 0.0
    %827 = vmatpush1.msra.mxu0 0.0
    %828 = vmatprep.subr.mxu0 0.0
    %829 = vmatpush1.msra.mxu0 0.0
    %830 = vmatprep.subr.mxu0 0.0
    %831 = vmatpush1.msra.mxu0 0.0
    %832 = vmatprep.subr.mxu0 0.0
    %833 = vmatpush1.msra.mxu0 0.0
    %834 = vmatprep.subr.mxu0 0.0
    %835 = vmatpush1.msra.mxu0 0.0
    %836 = vmatprep.subr.mxu0 0.0
    %837 = vmatpush1.msra.mxu0 0.0
    %838 = vmatprep.subr.mxu0 0.0
    %839 = vmatpush1.msra.mxu0 0.0
    %840 = vmatprep.subr.mxu0 0.0
    %841 = vmatpush1.msra.mxu0 0.0
    %842 = vmatprep.subr.mxu0 0.0
    %843 = vmatpush1.msra.mxu0 0.0
    %844 = vmatprep.subr.mxu0 0.0
    %845 = vmatpush1.msra.mxu0 0.0
    %846 = vmatprep.subr.mxu0 0.0
    %847 = vmatpush1.msra.mxu0 0.0
    %848 = vmatprep.subr.mxu0 0.0
    %849 = vmatpush1.msra.mxu0 0.0
    %850 = vmatprep.subr.mxu0 0.0
    %851 = vmatpush1.msra.mxu0 0.0
    %852 = vmatprep.subr.mxu0 0.0
    %853 = vmatpush1.msra.mxu0 0.0
    %854 = vmatprep.subr.mxu0 0.0
    %855 = vmatpush1.msra.mxu0 0.0
    %856 = vmatprep.subr.mxu0 0.0
    %857 = vmatpush1.msra.mxu0 0.0
    %858 = vmatprep.subr.mxu0 0.0
    %859 = vmatpush1.msra.mxu0 0.0
    %860 = vmatprep.mubr.f32.mxu0 0.0
    %861 = vmatmul.mubr.f32.gmra.mrb[0].mxu0 %v794
    %v862 = vpop.f32.mrb[0].mxu0
    %v863 = vadd.f32 0.0, %v862
    %v864 = vpop.f32.mrb[0].mxu0
    %v865 = vadd.f32 0.0, %v864
    %866 = vdwg.mxu0
    %v869 = vrot.slane %v863, 3
    %v870 = vrot.slane %v865, 3
    %v873 = vadd.f32 %v163, %v869
    %v874 = vadd.f32 %v165, %v870
    %v875 = vxor.u32 %v873, 2147483648
    %v876 = vxor.u32 %v874, 2147483648
    %v877 = vmul.f32 %v875, 1.442695
    %v878 = vpow.pop %v877
    %v879 = vmul.f32 %v876, 1.442695
    %v880 = vpow.pop %v879
    %v881 = vadd.f32 %v878, 1.0
    %v882 = vadd.f32 %v880, 1.0
    %v883 = vrcp.pop %v881
    %v884 = vmul.f32 1.0, %v883
    %v885 = vrcp.pop %v882
    %v886 = vmul.f32 1.0, %v885
    %v887 = vtanh.pop %v874
    %v889 = vrot.slane %v779, 7
    %v891 = vmul.f32 %v884, %v889
    %893 = vrot.lane.b32.xlu0 %v887, 64
    %v894 = vpop.permute.xlu0 %893
    %v896 = vmul.f32 %v884, %v894
    %898 = vrot.lane.b32.xlu0 %v896, 64
    %v899 = vpop.permute.xlu0 %898
    %v901 = vadd.f32 %v891, %v899
    %v902 = vtanh.pop %v901
    %904 = vrot.lane.b32.xlu0 %v902, 64
    %v905 = vpop.permute.xlu0 %904
    %v907 = vmul.f32 %v886, %v905
    %vm908 = vcmask 259077
    %909 = vst.msk [vmem:[#allocation2] sm:$0x20] %vm908, %v907
    %911 = vrot.lane.b32.xlu0 %v907, 96
    %v912 = vpop.permute.xlu0 %911
    %914 = vst.msk [vmem:[#allocation3 - $0x3] sm:$0x20] %vm908, %v912
    %v915 = vrot.slane %v907, 5
    %v916 = vsel %vm92, %v915, 0
    %918 = vmatprep.subr.mxu0 %v168
    %919 = vmatpush1.msra.mxu0 %v167
    %920 = vmatprep.subr.mxu0 %v170
    %921 = vmatpush1.msra.mxu0 %v169
    %922 = vmatprep.subr.mxu0 %v172
    %923 = vmatpush1.msra.mxu0 %v171
    %924 = vmatprep.subr.mxu0 %v174
    %925 = vmatpush1.msra.mxu0 %v173
    %926 = vmatprep.subr.mxu0 %v176
    %927 = vmatpush1.msra.mxu0 %v175
    %928 = vmatprep.subr.mxu0 %v178
    %929 = vmatpush1.msra.mxu0 %v177
    %930 = vmatprep.subr.mxu0 %v180
    %931 = vmatpush1.msra.mxu0 %v179
    %932 = vmatprep.subr.mxu0 %v182
    %933 = vmatpush1.msra.mxu0 %v181
    %934 = vmatprep.subr.mxu0 0.0
    %935 = vmatpush1.msra.mxu0 0.0
    %936 = vmatprep.subr.mxu0 0.0
    %937 = vmatpush1.msra.mxu0 0.0
    %938 = vmatprep.subr.mxu0 0.0
    %939 = vmatpush1.msra.mxu0 0.0
    %940 = vmatprep.subr.mxu0 0.0
    %941 = vmatpush1.msra.mxu0 0.0
    %942 = vmatprep.subr.mxu0 0.0
    %943 = vmatpush1.msra.mxu0 0.0
    %944 = vmatprep.subr.mxu0 0.0
    %945 = vmatpush1.msra.mxu0 0.0
    %946 = vmatprep.subr.mxu0 0.0
    %947 = vmatpush1.msra.mxu0 0.0
    %948 = vmatprep.subr.mxu0 0.0
    %949 = vmatpush1.msra.mxu0 0.0
    %950 = vmatprep.subr.mxu0 0.0
    %951 = vmatpush1.msra.mxu0 0.0
    %952 = vmatprep.subr.mxu0 0.0
    %953 = vmatpush1.msra.mxu0 0.0
    %954 = vmatprep.subr.mxu0 0.0
    %955 = vmatpush1.msra.mxu0 0.0
    %956 = vmatprep.subr.mxu0 0.0
    %957 = vmatpush1.msra.mxu0 0.0
    %958 = vmatprep.subr.mxu0 0.0
    %959 = vmatpush1.msra.mxu0 0.0
    %960 = vmatprep.subr.mxu0 0.0
    %961 = vmatpush1.msra.mxu0 0.0
    %962 = vmatprep.subr.mxu0 0.0
    %963 = vmatpush1.msra.mxu0 0.0
    %964 = vmatprep.subr.mxu0 0.0
    %965 = vmatpush1.msra.mxu0 0.0
    %966 = vmatprep.subr.mxu0 0.0
    %967 = vmatpush1.msra.mxu0 0.0
    %968 = vmatprep.subr.mxu0 0.0
    %969 = vmatpush1.msra.mxu0 0.0
    %970 = vmatprep.subr.mxu0 0.0
    %971 = vmatpush1.msra.mxu0 0.0
    %972 = vmatprep.subr.mxu0 0.0
    %973 = vmatpush1.msra.mxu0 0.0
    %974 = vmatprep.subr.mxu0 0.0
    %975 = vmatpush1.msra.mxu0 0.0
    %976 = vmatprep.subr.mxu0 0.0
    %977 = vmatpush1.msra.mxu0 0.0
    %978 = vmatprep.subr.mxu0 0.0
    %979 = vmatpush1.msra.mxu0 0.0
    %980 = vmatprep.subr.mxu0 0.0
    %981 = vmatpush1.msra.mxu0 0.0
    %982 = vmatprep.mubr.f32.mxu0 0.0
    %983 = vmatmul.mubr.f32.gmra.mrb[0].mxu0 %v916
    %v984 = vpop.f32.mrb[0].mxu0
    %v985 = vadd.f32 0.0, %v984
    %v986 = vpop.f32.mrb[0].mxu0
    %v987 = vadd.f32 0.0, %v986
    %988 = vdwg.mxu0
    %v991 = vrot.slane %v985, 2
    %v992 = vrot.slane %v987, 2
    %v995 = vadd.f32 %v163, %v991
    %v996 = vadd.f32 %v165, %v992
    %v997 = vxor.u32 %v995, 2147483648
    %v998 = vxor.u32 %v996, 2147483648
    %v999 = vmul.f32 %v997, 1.442695
    %v1000 = vpow.pop %v999
    %v1001 = vmul.f32 %v998, 1.442695
    %v1002 = vpow.pop %v1001
    %v1003 = vadd.f32 %v1000, 1.0
    %v1004 = vadd.f32 %v1002, 1.0
    %v1005 = vrcp.pop %v1003
    %v1006 = vmul.f32 1.0, %v1005
    %v1007 = vrcp.pop %v1004
    %v1008 = vmul.f32 1.0, %v1007
    %v1009 = vtanh.pop %v996
    %v1011 = vrot.slane %v901, 7
    %v1013 = vmul.f32 %v1006, %v1011
    %1015 = vrot.lane.b32.xlu0 %v1009, 64
    %v1016 = vpop.permute.xlu0 %1015
    %v1018 = vmul.f32 %v1006, %v1016
    %1020 = vrot.lane.b32.xlu0 %v1018, 64
    %v1021 = vpop.permute.xlu0 %1020
    %v1023 = vadd.f32 %v1013, %v1021
    %v1024 = vtanh.pop %v1023
    %1026 = vrot.lane.b32.xlu0 %v1024, 64
    %v1027 = vpop.permute.xlu0 %1026
    %v1029 = vmul.f32 %v1008, %v1027
    %vm1030 = vcmask 260102
    %1031 = vst.msk [vmem:[#allocation2] sm:$0x40] %vm1030, %v1029
    %1033 = vrot.lane.b32.xlu0 %v1029, 96
    %v1034 = vpop.permute.xlu0 %1033
    %1036 = vst.msk [vmem:[#allocation3 - $0x5] sm:$0x40] %vm1030, %v1034
    %v1037 = vrot.slane %v1029, 6
    %v1038 = vsel %vm92, %v1037, 0
    %1040 = vmatprep.subr.mxu0 %v168
    %1041 = vmatpush1.msra.mxu0 %v167
    %1042 = vmatprep.subr.mxu0 %v170
    %1043 = vmatpush1.msra.mxu0 %v169
    %1044 = vmatprep.subr.mxu0 %v172
    %1045 = vmatpush1.msra.mxu0 %v171
    %1046 = vmatprep.subr.mxu0 %v174
    %1047 = vmatpush1.msra.mxu0 %v173
    %1048 = vmatprep.subr.mxu0 %v176
    %1049 = vmatpush1.msra.mxu0 %v175
    %1050 = vmatprep.subr.mxu0 %v178
    %1051 = vmatpush1.msra.mxu0 %v177
    %1052 = vmatprep.subr.mxu0 %v180
    %1053 = vmatpush1.msra.mxu0 %v179
    %1054 = vmatprep.subr.mxu0 %v182
    %1055 = vmatpush1.msra.mxu0 %v181
    %1056 = vmatprep.subr.mxu0 0.0
    %1057 = vmatpush1.msra.mxu0 0.0
    %1058 = vmatprep.subr.mxu0 0.0
    %1059 = vmatpush1.msra.mxu0 0.0
    %1060 = vmatprep.subr.mxu0 0.0
    %1061 = vmatpush1.msra.mxu0 0.0
    %1062 = vmatprep.subr.mxu0 0.0
    %1063 = vmatpush1.msra.mxu0 0.0
    %1064 = vmatprep.subr.mxu0 0.0
    %1065 = vmatpush1.msra.mxu0 0.0
    %1066 = vmatprep.subr.mxu0 0.0
    %1067 = vmatpush1.msra.mxu0 0.0
    %1068 = vmatprep.subr.mxu0 0.0
    %1069 = vmatpush1.msra.mxu0 0.0
    %1070 = vmatprep.subr.mxu0 0.0
    %1071 = vmatpush1.msra.mxu0 0.0
    %1072 = vmatprep.subr.mxu0 0.0
    %1073 = vmatpush1.msra.mxu0 0.0
    %1074 = vmatprep.subr.mxu0 0.0
    %1075 = vmatpush1.msra.mxu0 0.0
    %1076 = vmatprep.subr.mxu0 0.0
    %1077 = vmatpush1.msra.mxu0 0.0
    %1078 = vmatprep.subr.mxu0 0.0
    %1079 = vmatpush1.msra.mxu0 0.0
    %1080 = vmatprep.subr.mxu0 0.0
    %1081 = vmatpush1.msra.mxu0 0.0
    %1082 = vmatprep.subr.mxu0 0.0
    %1083 = vmatpush1.msra.mxu0 0.0
    %1084 = vmatprep.subr.mxu0 0.0
    %1085 = vmatpush1.msra.mxu0 0.0
    %1086 = vmatprep.subr.mxu0 0.0
    %1087 = vmatpush1.msra.mxu0 0.0
    %1088 = vmatprep.subr.mxu0 0.0
    %1089 = vmatpush1.msra.mxu0 0.0
    %1090 = vmatprep.subr.mxu0 0.0
    %1091 = vmatpush1.msra.mxu0 0.0
    %1092 = vmatprep.subr.mxu0 0.0
    %1093 = vmatpush1.msra.mxu0 0.0
    %1094 = vmatprep.subr.mxu0 0.0
    %1095 = vmatpush1.msra.mxu0 0.0
    %1096 = vmatprep.subr.mxu0 0.0
    %1097 = vmatpush1.msra.mxu0 0.0
    %1098 = vmatprep.subr.mxu0 0.0
    %1099 = vmatpush1.msra.mxu0 0.0
    %1100 = vmatprep.subr.mxu0 0.0
    %1101 = vmatpush1.msra.mxu0 0.0
    %1102 = vmatprep.subr.mxu0 0.0
    %1103 = vmatpush1.msra.mxu0 0.0
    %1104 = vmatprep.mubr.f32.mxu0 0.0
    %1105 = vmatmul.mubr.f32.gmra.mrb[0].mxu0 %v1038
    %v1106 = vpop.f32.mrb[0].mxu0
    %v1107 = vadd.f32 0.0, %v1106
    %v1108 = vpop.f32.mrb[0].mxu0
    %v1109 = vadd.f32 0.0, %v1108
    %1110 = vdwg.mxu0
    %v1113 = vrot.slane %v1107, 1
    %v1114 = vrot.slane %v1109, 1
    %v1117 = vadd.f32 %v163, %v1113
    %v1118 = vadd.f32 %v165, %v1114
    %v1119 = vxor.u32 %v1117, 2147483648
    %v1120 = vxor.u32 %v1118, 2147483648
    %v1121 = vmul.f32 %v1119, 1.442695
    %v1122 = vpow.pop %v1121
    %v1123 = vmul.f32 %v1120, 1.442695
    %v1124 = vpow.pop %v1123
    %v1125 = vadd.f32 %v1122, 1.0
    %v1126 = vadd.f32 %v1124, 1.0
    %v1127 = vrcp.pop %v1125
    %v1128 = vmul.f32 1.0, %v1127
    %v1129 = vrcp.pop %v1126
    %v1130 = vmul.f32 1.0, %v1129
    %v1131 = vtanh.pop %v1118
    %v1133 = vrot.slane %v1023, 7
    %v1135 = vmul.f32 %v1128, %v1133
    %1137 = vrot.lane.b32.xlu0 %v1131, 64
    %v1138 = vpop.permute.xlu0 %1137
    %v1140 = vmul.f32 %v1128, %v1138
    %1142 = vrot.lane.b32.xlu0 %v1140, 64
    %v1143 = vpop.permute.xlu0 %1142
    %v1145 = vadd.f32 %v1135, %v1143
    %v1146 = vtanh.pop %v1145
    %1148 = vrot.lane.b32.xlu0 %v1146, 64
    %v1149 = vpop.permute.xlu0 %1148
    %v1151 = vmul.f32 %v1130, %v1149
    %vm1152 = vcmask 261127
    %1153 = vst.msk [vmem:[#allocation2] sm:$0x80] %vm1152, %v1151
    %1155 = vrot.lane.b32.xlu0 %v1151, 96
    %v1156 = vpop.permute.xlu0 %1155
    %1158 = vst.msk [vmem:[#allocation3 - $0x7] sm:$0x80] %vm1152, %v1156
    %v1159 = vld [vmem:[#allocation2] sm:$0xff]
    %v1160 = vld [vmem:[#allocation3] sm:$0xff]
    %1162 = vrot.lane.b32.xlu0 %v1160, 32
    %v1163 = vpop.permute.xlu0 %1162
    %vm1165 = vcmask 261120
    %v1166 = vsel %vm1165, %v1159, %v1163
    %v1167 = vrot.slane %v1151, 7
    %v1168 = vsel %vm92, %v1167, 0
    %v1171 = vsel %vm92, %v1166, 0
    %1173 = vmatprep.subr.mxu0 0.0
    %1174 = vmatpush1.xpose.msra.mxu0 %v1171
    %1175 = vmatprep.subr.mxu0 0.0
    %1176 = vmatpush1.xpose.msra.mxu0 0.0
    %1177 = vmatprep.subr.mxu0 0.0
    %1178 = vmatpush1.xpose.msra.mxu0 0.0
    %1179 = vmatprep.subr.mxu0 0.0
    %1180 = vmatpush1.xpose.msra.mxu0 0.0
    %1181 = vmatprep.subr.mxu0 0.0
    %1182 = vmatpush1.xpose.msra.mxu0 0.0
    %1183 = vmatprep.subr.mxu0 0.0
    %1184 = vmatpush1.xpose.msra.mxu0 0.0
    %1185 = vmatprep.subr.mxu0 0.0
    %1186 = vmatpush1.xpose.msra.mxu0 0.0
    %1187 = vmatprep.subr.mxu0 0.0
    %1188 = vmatpush1.xpose.msra.mxu0 0.0
    %1189 = vmatprep.subr.mxu0 0.0
    %1190 = vmatpush1.xpose.msra.mxu0 0.0
    %1191 = vmatprep.subr.mxu0 0.0
    %1192 = vmatpush1.xpose.msra.mxu0 0.0
    %1193 = vmatprep.subr.mxu0 0.0
    %1194 = vmatpush1.xpose.msra.mxu0 0.0
    %1195 = vmatprep.subr.mxu0 0.0
    %1196 = vmatpush1.xpose.msra.mxu0 0.0
    %1197 = vmatprep.subr.mxu0 0.0
    %1198 = vmatpush1.xpose.msra.mxu0 0.0
    %1199 = vmatprep.subr.mxu0 0.0
    %1200 = vmatpush1.xpose.msra.mxu0 0.0
    %1201 = vmatprep.subr.mxu0 0.0
    %1202 = vmatpush1.xpose.msra.mxu0 0.0
    %1203 = vmatprep.subr.mxu0 0.0
    %1204 = vmatpush1.xpose.msra.mxu0 0.0
    %1205 = vmatprep.subr.mxu0 0.0
    %1206 = vmatpush1.xpose.msra.mxu0 0.0
    %1207 = vmatprep.subr.mxu0 0.0
    %1208 = vmatpush1.xpose.msra.mxu0 0.0
    %1209 = vmatprep.subr.mxu0 0.0
    %1210 = vmatpush1.xpose.msra.mxu0 0.0
    %1211 = vmatprep.subr.mxu0 0.0
    %1212 = vmatpush1.xpose.msra.mxu0 0.0
    %1213 = vmatprep.subr.mxu0 0.0
    %1214 = vmatpush1.xpose.msra.mxu0 0.0
    %1215 = vmatprep.subr.mxu0 0.0
    %1216 = vmatpush1.xpose.msra.mxu0 0.0
    %1217 = vmatprep.subr.mxu0 0.0
    %1218 = vmatpush1.xpose.msra.mxu0 0.0
    %1219 = vmatprep.subr.mxu0 0.0
    %1220 = vmatpush1.xpose.msra.mxu0 0.0
    %1221 = vmatprep.subr.mxu0 0.0
    %1222 = vmatpush1.xpose.msra.mxu0 0.0
    %1223 = vmatprep.subr.mxu0 0.0
    %1224 = vmatpush1.xpose.msra.mxu0 0.0
    %1225 = vmatprep.subr.mxu0 0.0
    %1226 = vmatpush1.xpose.msra.mxu0 0.0
    %1227 = vmatprep.subr.mxu0 0.0
    %1228 = vmatpush1.xpose.msra.mxu0 0.0
    %1229 = vmatprep.subr.mxu0 0.0
    %1230 = vmatpush1.xpose.msra.mxu0 0.0
    %1231 = vmatprep.subr.mxu0 0.0
    %1232 = vmatpush1.xpose.msra.mxu0 0.0
    %1233 = vmatprep.subr.mxu0 0.0
    %1234 = vmatpush1.xpose.msra.mxu0 0.0
    %1235 = vmatprep.subr.mxu0 0.0
    %1236 = vmatpush1.xpose.msra.mxu0 0.0
    %1237 = vmatprep.mubr.f32.mxu0 0.0
    %1238 = vmatmul.mubr.f32.gmra.mrb[0].mxu0 %v1168
    %v1239 = vpop.f32.mrb[0].mxu0
    %v1240 = vadd.f32 0.0, %v1239
    %v1241 = vpop.f32.mrb[0].mxu0
    %1242 = vdwg.mxu0
    %vm1243 = vcmask 57344
    %v1244 = vsel %vm1243, %v1240, -inf
    %1245 = vmax.xlane.f32.xlu0 %v1244
    %v1246 = vpop.xlane.xlu0 %1245
    %v1247 = vsub.f32 %v1240, %v1246
    %v1248 = vmul.f32 %v1247, 1.442695
    %v1249 = vpow.pop %v1248
    %v1250 = vsel %vm1243, %v1249, 0.0
    %1251 = vadd.xlane.f32.xlu0 %v1250
    %v1252 = vpop.xlane.xlu0 %1251
    %v1253 = vrcp.pop %v1252
    %v1254 = vmul.f32 %v1249, %v1253
    %1255 = vst.msk [vmem:[#allocation10] sm:$0x1] %vm1243, %v1254
    // Predicated region
    $region38: #{tpu_custom_call.1} parent=1 // pred_check
      _
    $region39: #{tpu_custom_call.1} parent=1 // pred_check_branch
      %1257 = sbr.rel (0) target = $region41
    $region40: #{tpu_custom_call.1} parent=1 // pred_region
      %s1259 = ssub.s32 16, 16
      %1260 = vsyncadd [#allocation6], %s1259
      %s1262 = sshll.u32 [#allocation10], 4
      %s1263 = int_to_ptr.vmem [resolvable:$true] %s1262
      %1265 = dma.vmem_to_hbm [thread:$0]  %s1263, 16, %s6, [#allocation6]
    $region41: #{tpu_custom_call.1} parent=1 // pred_fallthru
      _
    // Predicated region
    $region42: #{tpu_custom_call.1} parent=1 // pred_check
      _
    $region43: #{tpu_custom_call.1} parent=1 // pred_check_branch
      %1267 = sbr.rel (0) target = $region45
    $region44: #{tpu_custom_call.1} parent=1 // pred_region
      %1268 = dma.done [#allocation6], 16
    $region45: #{tpu_custom_call.1} parent=1 // pred_fallthru
      _
    %1269 = vsyncpa [#allocation5], 1
    %1270 = vsyncpa [#allocation8], 1
    %1271 = vsyncpa [#allocation6], 1

</llo_original>
